<compile_context>
chip_gen: v6e
topology: v6e:2x2x1
jax: 0.10.0
libtpu: 0.0.40
codegen_flags: <defaults>
</compile_context>

<pallas_src>
import jax
import jax.numpy as jnp
from jax.experimental import pallas as pl
from jax.experimental.pallas import tpu as pltpu

_BIG = 1e30  # sentinel "infinite" squared distance for padded points


def _round_up(x, m):
    return ((x + m - 1) // m) * m


def _augment_lhs(xyz, n_pad):
    """(B, N, 3) -> (B, n_pad, 8) f32, row_i = [-2*x_i, |x_i|^2, 1, 0, 0, 0]."""
    b, n, _ = xyz.shape
    p = xyz.astype(jnp.float32)
    sq = jnp.sum(p * p, axis=-1, keepdims=True)                    # (B, N, 1)
    aug = jnp.concatenate(
        [-2.0 * p, sq, jnp.ones((b, n, 1), jnp.float32),
         jnp.zeros((b, n, 3), jnp.float32)], axis=-1)              # (B, N, 8)
    pad_row = jnp.array([0.0, 0.0, 0.0, _BIG, 1.0, 0.0, 0.0, 0.0], jnp.float32)
    pad = jnp.broadcast_to(pad_row, (b, n_pad - n, 8))
    return jnp.concatenate([aug, pad], axis=1)                     # (B, n_pad, 8)


def _augment_rhs(xyz, m_pad):
    """(B, M, 3) -> (B, 8, m_pad) f32, col_j = [y_j, 1, |y_j|^2, 0, 0, 0]."""
    b, m, _ = xyz.shape
    p = xyz.astype(jnp.float32)
    sq = jnp.sum(p * p, axis=-1, keepdims=True)                    # (B, M, 1)
    aug = jnp.concatenate(
        [p, jnp.ones((b, m, 1), jnp.float32), sq,
         jnp.zeros((b, m, 3), jnp.float32)], axis=-1)              # (B, M, 8)
    pad_row = jnp.array([0.0, 0.0, 0.0, 1.0, _BIG, 0.0, 0.0, 0.0], jnp.float32)
    pad = jnp.broadcast_to(pad_row, (b, m_pad - m, 8))
    aug = jnp.concatenate([aug, pad], axis=1)                      # (B, m_pad, 8)
    return jnp.transpose(aug, (0, 2, 1))                           # (B, 8, m_pad)


def _chamfer_kernel(a_ref, b_ref, d1_ref, d2_ref):
    # a_ref : (1, tn, 8)     augmented xyz1 tile (point-major)
    # b_ref : (1, 8, tm)     augmented xyz2 tile (coordinate-major, lane-dense)
    # d1_ref: (1, 1, tn)     dist1 accumulator (resident across the M/j axis)
    # d2_ref: (1, 1, m_pad)  dist2 accumulator (resident across i and j axes)
    i = pl.program_id(1)
    j = pl.program_id(2)

    a = a_ref[0]                                   # (tn, 8)
    b = b_ref[0]                                   # (8, tm)

    # Full squared-distance tile straight off the MXU (augmented K=8 matmul):
    #   d[p, q] = |x_p|^2 + |y_q|^2 - 2 * x_p . y_q
    d = jax.lax.dot_general(
        a, b, dimension_numbers=(((1,), (0,)), ((), ())),
        preferred_element_type=jnp.float32)        # (tn, tm)
    d = jnp.maximum(d, 0.0)                        # guard cancellation negatives

    tn, tm = d.shape

    # dist1: running min over the M (j) axis; output block resident across j.
    @pl.when(j == 0)
    def _():
        d1_ref[0, 0, :] = jnp.full((tn,), jnp.inf, dtype=jnp.float32)

    d1_ref[0, 0, :] = jnp.minimum(d1_ref[0, 0, :], jnp.min(d, axis=1))

    # dist2: running min over the N (i) axis; the full-M output block is
    # resident within a batch (block index constant across i and j), so it is
    # only DMA'd back to HBM when the batch changes.
    off = pl.multiple_of(j * tm, tm)

    @pl.when(i == 0)
    def _():
        d2_ref[0, 0, pl.ds(off, tm)] = jnp.full((tm,), jnp.inf, dtype=jnp.float32)

    cur = d2_ref[0, 0, pl.ds(off, tm)]
    d2_ref[0, 0, pl.ds(off, tm)] = jnp.minimum(cur, jnp.min(d, axis=0))


def chamfer_distance(xyz1, xyz2, *, tile_n=256, tile_m=1024):
    """Forward of the ChamferDistance module.

    xyz1: (B, N, 3), xyz2: (B, M, 3) (any float dtype; cast to f32 while
    building the augmented operands).
    Returns (loss, dist1, dist2) with dist1: (B, N) f32, dist2: (B, M) f32.

    Tile defaults (tn=256, tm=1024, d-tile 1 MiB) are sized conservatively for
    v7x's 64 MiB VMEM; on v6e/v5e (128 MiB) tile_m can be raised to 2048-4096
    to further amortize per-grid-step overhead.
    """
    B, N, _ = xyz1.shape
    _, M, _ = xyz2.shape

    tn = min(tile_n, _round_up(N, 128))
    tm = min(tile_m, _round_up(M, 128))
    n_pad = _round_up(N, tn)
    m_pad = _round_up(M, tm)

    a = _augment_lhs(xyz1, n_pad)       # (B, n_pad, 8) f32
    bm = _augment_rhs(xyz2, m_pad)      # (B, 8, m_pad) f32

    grid = (B, n_pad // tn, m_pad // tm)

    flops = 2 * B * n_pad * m_pad * 8
    bytes_accessed = 4 * (a.size + grid[1] * bm.size + B * (n_pad + m_pad))

    d1_p, d2_p = pl.pallas_call(
        _chamfer_kernel,
        out_shape=(
            jax.ShapeDtypeStruct((B, 1, n_pad), jnp.float32),
            jax.ShapeDtypeStruct((B, 1, m_pad), jnp.float32),
        ),
        grid_spec=pltpu.PrefetchScalarGridSpec(
            num_scalar_prefetch=0,
            grid=grid,
            in_specs=[
                pl.BlockSpec((1, tn, 8), lambda b, i, j: (b, i, 0)),
                pl.BlockSpec((1, 8, tm), lambda b, i, j: (b, 0, j)),
            ],
            out_specs=[
                pl.BlockSpec((1, 1, tn), lambda b, i, j: (b, 0, i)),
                pl.BlockSpec((1, 1, m_pad), lambda b, i, j: (b, 0, 0)),
            ],
        ),
        compiler_params=pltpu.CompilerParams(
            # Batch axis shards across TensorCores (v7x); the i axis must stay
            # "arbitrary" because the dist2 accumulator reduces over it.
            dimension_semantics=("parallel", "arbitrary", "arbitrary"),
            vmem_limit_bytes=32 * 1024 * 1024,
        ),
        cost_estimate=pl.CostEstimate(
            flops=flops, transcendentals=0, bytes_accessed=bytes_accessed),
    )(a, bm)

    dist1 = d1_p[:, 0, :N]                          # (B, N)
    dist2 = d2_p[:, 0, :M]                          # (B, M)
    loss = jnp.mean(dist1) + jnp.mean(dist2)        # matches torch.mean + torch.mean
    return loss, dist1, dist2


def _reference(xyz1, xyz2):
    diff = xyz1[:, :, None, :] - xyz2[:, None, :, :]     # (B, N, M, 3)
    d = jnp.sum(diff * diff, axis=-1)                    # (B, N, M)
    r1 = jnp.min(d, axis=2)
    r2 = jnp.min(d, axis=1)
    return jnp.mean(r1) + jnp.mean(r2), r1, r2


if __name__ == "__main__":
    key = jax.random.PRNGKey(0)
    k1, k2, k3, k4 = jax.random.split(key, 4)

    # --- Test 1: small shapes, single tile per batch -------------------------
    B, N, M = 2, 16, 24
    xyz1 = jax.random.normal(k1, (B, N, 3), dtype=jnp.float32)
    xyz2 = jax.random.normal(k2, (B, M, 3), dtype=jnp.float32)

    loss, dist1, dist2 = jax.jit(chamfer_distance)(xyz1, xyz2)
    jax.block_until_ready((loss, dist1, dist2))

    ref_loss, ref1, ref2 = _reference(xyz1, xyz2)
    assert dist1.shape == (B, N) and dist2.shape == (B, M)
    assert jnp.allclose(dist1, ref1, atol=1e-4), "dist1 mismatch"
    assert jnp.allclose(dist2, ref2, atol=1e-4), "dist2 mismatch"
    assert jnp.allclose(loss, ref_loss, atol=1e-4), "loss mismatch"

    # --- Test 2: multi-tile grid with ragged (padded) last tiles -------------
    B2, N2, M2 = 2, 200, 300
    p1 = jax.random.normal(k3, (B2, N2, 3), dtype=jnp.float32)
    p2 = jax.random.normal(k4, (B2, M2, 3), dtype=jnp.float32)

    fn = jax.jit(lambda a, b: chamfer_distance(a, b, tile_n=128, tile_m=128))
    loss2, d1b, d2b = fn(p1, p2)
    jax.block_until_ready((loss2, d1b, d2b))

    ref_loss2, r1b, r2b = _reference(p1, p2)
    assert d1b.shape == (B2, N2) and d2b.shape == (B2, M2)
    assert jnp.allclose(d1b, r1b, atol=1e-4), "tiled dist1 mismatch"
    assert jnp.allclose(d2b, r2b, atol=1e-4), "tiled dist2 mismatch"
    assert jnp.allclose(loss2, ref_loss2, atol=1e-4), "tiled loss mismatch"

    print("KERNEL_OK")
</pallas_src>

<mosaic_0001>
module attributes {stable_mosaic.version = 11 : i64} {
  func.func @_chamfer_kernel(%arg0: i32, %arg1: i32, %arg2: i32, %arg3: memref<1x128x8xf32, #tpu.memory_space<vmem>>, %arg4: memref<1x8x128xf32, #tpu.memory_space<vmem>>, %arg5: memref<1x1x128xf32, #tpu.memory_space<vmem>>, %arg6: memref<1x1x128xf32, #tpu.memory_space<vmem>>) attributes {dimension_semantics = [#tpu.dimension_semantics<parallel>, #tpu.dimension_semantics<arbitrary>, #tpu.dimension_semantics<arbitrary>], iteration_bounds = array<i64: 2, 1, 1>, scalar_prefetch = 0 : i64, scratch_operands = 0 : i64, tpu.core_type = #tpu.core_type<tc>, window_params = [{transform_indices = @transform_0, window_bounds = array<i64: 1, 128, 8>}, {transform_indices = @transform_1, window_bounds = array<i64: 1, 8, 128>}, {transform_indices = @transform_2, window_bounds = array<i64: 1, 1, 128>}, {transform_indices = @transform_3, window_bounds = array<i64: 1, 1, 128>}]} {
    %c0 = arith.constant 0 : index
    %c0_0 = arith.constant 0 : index
    %c0_1 = arith.constant 0 : index
    %0 = vector.load %arg3[%c0, %c0_0, %c0_1] : memref<1x128x8xf32, #tpu.memory_space<vmem>>, vector<1x128x8xf32>
    %1 = vector.shape_cast %0 : vector<1x128x8xf32> to vector<128x8xf32>
    %c0_2 = arith.constant 0 : index
    %c0_3 = arith.constant 0 : index
    %c0_4 = arith.constant 0 : index
    %2 = vector.load %arg4[%c0_2, %c0_3, %c0_4] : memref<1x8x128xf32, #tpu.memory_space<vmem>>, vector<1x8x128xf32>
    %3 = vector.shape_cast %2 : vector<1x8x128xf32> to vector<8x128xf32>
    %cst = arith.constant dense<0.000000e+00> : vector<128x128xf32>
    %4 = tpu.matmul %1, %3, %cst {dimension_numbers = #tpu.dot_dimension_numbers<[1], [0], [0], [1], [0, 0, 1, 1], [], []>} : vector<128x8xf32>, vector<8x128xf32>, vector<128x128xf32> -> vector<128x128xf32>
    %cst_5 = arith.constant 0.000000e+00 : f32
    %5 = vector.broadcast %cst_5 : f32 to vector<128x128xf32>
    %6 = arith.maximumf %4, %5 : vector<128x128xf32>
    %c0_i32 = arith.constant 0 : i32
    %7 = arith.cmpi eq, %arg2, %c0_i32 : i32
    %8 = arith.extui %7 : i1 to i32
    %c0_i32_6 = arith.constant 0 : i32
    %9 = arith.cmpi ne, %8, %c0_i32_6 : i32
    scf.if %9 {
      %cst_21 = arith.constant 0x7F800000 : f32
      %31 = vector.broadcast %cst_21 : f32 to vector<128xf32>
      %c0_22 = arith.constant 0 : index
      %c0_23 = arith.constant 0 : index
      %c0_24 = arith.constant 0 : index
      %32 = vector.load %arg5[%c0_22, %c0_23, %c0_24] : memref<1x1x128xf32, #tpu.memory_space<vmem>>, vector<1x1x128xf32>
      %33 = vector.shape_cast %32 : vector<1x1x128xf32> to vector<128xf32>
      %34 = vector.shape_cast %31 : vector<128xf32> to vector<1x1x128xf32>
      tpu.vector_store %arg5[%c0_22, %c0_23, %c0_24], %34 {strides = array<i32>} : memref<1x1x128xf32, #tpu.memory_space<vmem>>, vector<1x1x128xf32>,
    } else {
    }
    %c0_7 = arith.constant 0 : index
    %c0_8 = arith.constant 0 : index
    %c0_9 = arith.constant 0 : index
    %10 = vector.load %arg5[%c0_7, %c0_8, %c0_9] : memref<1x1x128xf32, #tpu.memory_space<vmem>>, vector<1x1x128xf32>
    %11 = vector.shape_cast %10 : vector<1x1x128xf32> to vector<128xf32>
    %cst_10 = arith.constant dense<0x7F800000> : vector<128xf32>
    %12 = vector.multi_reduction <minimumf>, %6, %cst_10 [1] : vector<128x128xf32> to vector<128xf32>
    %13 = arith.minimumf %11, %12 : vector<128xf32>
    %c0_11 = arith.constant 0 : index
    %c0_12 = arith.constant 0 : index
    %c0_13 = arith.constant 0 : index
    %14 = vector.load %arg5[%c0_11, %c0_12, %c0_13] : memref<1x1x128xf32, #tpu.memory_space<vmem>>, vector<1x1x128xf32>
    %15 = vector.shape_cast %14 : vector<1x1x128xf32> to vector<128xf32>
    %16 = vector.shape_cast %13 : vector<128xf32> to vector<1x1x128xf32>
    tpu.vector_store %arg5[%c0_11, %c0_12, %c0_13], %16 {strides = array<i32>} : memref<1x1x128xf32, #tpu.memory_space<vmem>>, vector<1x1x128xf32>,
    %c128_i32 = arith.constant 128 : i32
    %17 = arith.muli %arg2, %c128_i32 : i32
    %18 = tpu.assume_multiple %17, 128 : i32
    %c0_i32_14 = arith.constant 0 : i32
    %19 = arith.cmpi eq, %arg1, %c0_i32_14 : i32
    %20 = arith.extui %19 : i1 to i32
    %c0_i32_15 = arith.constant 0 : i32
    %21 = arith.cmpi ne, %20, %c0_i32_15 : i32
    scf.if %21 {
      %cst_21 = arith.constant 0x7F800000 : f32
      %31 = vector.broadcast %cst_21 : f32 to vector<128xf32>
      %c0_22 = arith.constant 0 : index
      %c0_23 = arith.constant 0 : index
      %32 = arith.index_cast %18 : i32 to index
      %33 = vector.load %arg6[%c0_22, %c0_23, %32] : memref<1x1x128xf32, #tpu.memory_space<vmem>>, vector<1x1x128xf32>
      %34 = vector.shape_cast %33 : vector<1x1x128xf32> to vector<128xf32>
      %35 = vector.shape_cast %31 : vector<128xf32> to vector<1x1x128xf32>
      tpu.vector_store %arg6[%c0_22, %c0_23, %32], %35 {strides = array<i32>} : memref<1x1x128xf32, #tpu.memory_space<vmem>>, vector<1x1x128xf32>,
    } else {
    }
    %c0_16 = arith.constant 0 : index
    %c0_17 = arith.constant 0 : index
    %22 = arith.index_cast %18 : i32 to index
    %23 = vector.load %arg6[%c0_16, %c0_17, %22] : memref<1x1x128xf32, #tpu.memory_space<vmem>>, vector<1x1x128xf32>
    %24 = vector.shape_cast %23 : vector<1x1x128xf32> to vector<128xf32>
    %cst_18 = arith.constant dense<0x7F800000> : vector<128xf32>
    %25 = vector.multi_reduction <minimumf>, %6, %cst_18 [0] : vector<128x128xf32> to vector<128xf32>
    %26 = arith.minimumf %24, %25 : vector<128xf32>
    %c0_19 = arith.constant 0 : index
    %c0_20 = arith.constant 0 : index
    %27 = arith.index_cast %18 : i32 to index
    %28 = vector.load %arg6[%c0_19, %c0_20, %27] : memref<1x1x128xf32, #tpu.memory_space<vmem>>, vector<1x1x128xf32>
    %29 = vector.shape_cast %28 : vector<1x1x128xf32> to vector<128xf32>
    %30 = vector.shape_cast %26 : vector<128xf32> to vector<1x1x128xf32>
    tpu.vector_store %arg6[%c0_19, %c0_20, %27], %30 {strides = array<i32>} : memref<1x1x128xf32, #tpu.memory_space<vmem>>, vector<1x1x128xf32>,
    return
  }
  func.func @transform_0(%arg0: i32, %arg1: i32, %arg2: i32) -> (i32, i32, i32) {
    %c0_i32 = arith.constant 0 : i32
    %c0_i32_0 = arith.constant 0 : i32
    return %arg0, %arg1, %c0_i32 : i32, i32, i32
  }
  func.func @transform_1(%arg0: i32, %arg1: i32, %arg2: i32) -> (i32, i32, i32) {
    %c0_i32 = arith.constant 0 : i32
    %c0_i32_0 = arith.constant 0 : i32
    return %arg0, %c0_i32, %arg2 : i32, i32, i32
  }
  func.func @transform_2(%arg0: i32, %arg1: i32, %arg2: i32) -> (i32, i32, i32) {
    %c0_i32 = arith.constant 0 : i32
    %c0_i32_0 = arith.constant 0 : i32
    return %arg0, %c0_i32, %arg1 : i32, i32, i32
  }
  func.func @transform_3(%arg0: i32, %arg1: i32, %arg2: i32) -> (i32, i32, i32) {
    %c0_i32 = arith.constant 0 : i32
    %c0_i32_0 = arith.constant 0 : i32
    %c0_i32_1 = arith.constant 0 : i32
    return %arg0, %c0_i32, %c0_i32_0 : i32, i32, i32
  }
}

</mosaic_0001>

<llo_original>
// kernel: chamfer_distance.1
$region0: #{chamfer_distance.1}
  #allocation0 [shape = 'u32[]', space=smem, size = 0x4, offset = 0x4, fixed_abs, tag = 'smem constant byte address 0x4 - core index']
  #allocation1 [shape = 'u32[144,128]{1,0:T(1,128)}', space=vmem, size = 0x12000, scoped, tag = 'internal scratch']
  %s0 = inlined_call_operand.vmem [shape: f32[2,128,8], index: 0, kind: input, shape index: {}]
  %s1 = inlined_call_operand.vmem [shape: f32[2,8,128], index: 1, kind: input, shape index: {}]
  %s2 = inlined_call_operand.vmem [shape: f32[2,1,128], index: 2, kind: output, shape index: {0}]
  %s3 = inlined_call_operand.vmem [shape: f32[2,1,128], index: 3, kind: output, shape index: {1}]
  %4 = xla_tuple %s2, %s3
  %s5 = sld [smem:[#allocation0]]
  $region57: #{chamfer_distance.1} parent=0
    _
  %s7 = ssub.s32 1, %s5
  %s8 = scalar_select 0, %s7, %s5
  loop: start=0, step=1, limit=4
  $region2: #{chamfer_distance.1} parent=0 // loop_pre_header
    _
  $region3: #{chamfer_distance.1} parent=0 // loop_header
    %s10 = sphi 0, %s14
    %p11 = scmp.ge.s32.totalorder %s10, 4
    %s17 = sphi 0, %s36
    %s18 = sphi 0, %s32
    %s19 = sphi 0, %s28
    %s20 = sphi 0, %s17
    %s21 = sphi 0, %s18
    %s22 = sphi 0, %s19
    %s23 = sphi 0, %s20
    %s24 = sphi 0, %s21
    %s25 = sphi 0, %s22
    %s41 = sphi 0, %s43
    %s44 = sphi 0, %s41
    %s45 = sphi 0, %s44
    %s61 = sphi 0, %s45
    %s69 = sphi 0, %s71
    %s72 = sphi 0, %s69
    %s73 = sphi 0, %s72
    %s89 = sphi 0, %s73
    %s97 = sphi 0, %s99
    %s100 = sphi 0, %s97
    %s101 = sphi 0, %s100
    %s117 = sphi 0, %s101
    %s123 = sphi 0, %s125
    %s126 = sphi 0, %s123
    %s127 = sphi 0, %s126
    %s143 = sphi 0, %s127
  $region4: #{chamfer_distance.1} parent=0 // loop_header_branch
    %13 = sbr.rel (%p11) target = $region8
  $region5: #{chamfer_distance.1} parent=0 // loop_body
    %s15 = ssub.s32 %s10, 1
    %s16 = ssub.s32 %s10, 2
    %s26 = sadd.s32 1, %s19
    %p27 = scmp.ge.s32.totalorder %s26, 1
    %s28 = scalar_select %p27, 0, %s26
    %s29 = sadd.s32 1, %s18
    %s30 = scalar_select %p27, %s29, %s18
    %p31 = scmp.ge.s32.totalorder %s30, 1
    %s32 = scalar_select %p31, 0, %s30
    %s33 = sadd.s32 1, %s17
    %s34 = scalar_select %p31, %s33, %s17
    %p35 = scmp.ge.s32.totalorder %s34, 2
    %s36 = scalar_select %p35, 0, %s34
    %s37 = ssub.s32 %s17, %s36
    %s38 = ssub.s32 %s18, %s32
    %s39 = sor.u32 %s37, %s38
    %p40 = scmp.eq.s32.totalorder %s39, 0
    %s42 = sadd.s32 %s41, 1
    %s43 = scalar_select %p40, %s41, %s42
    %p46 = pneg %p40
    %p47 = scmp.eq.s32.totalorder %s10, 1
    %p48 = por %p46, %p47
    %p49 = scmp.ne.s32.totalorder %s41, %s44
    %p50 = scmp.eq.s32.totalorder %s10, 0
    %p51 = por %p49, %p50
    %p52 = scmp.ne.s32.totalorder %s41, %s44
    %p53 = scmp.eq.s32.totalorder %s15, 1
    %p54 = por %p52, %p53
    %p55 = scmp.ne.s32.totalorder %s44, %s45
    %p56 = scmp.eq.s32.totalorder %s15, 0
    %p57 = por %p55, %p56
    %p58 = scmp.ne.s32.totalorder %s44, %s45
    %p59 = scmp.eq.s32.totalorder %s16, 1
    %p60 = por %p58, %p59
    %p62 = scmp.ne.s32.totalorder %s45, %s61
    %p63 = scmp.eq.s32.totalorder %s16, 0
    %p64 = por %p62, %p63
    %s65 = ssub.s32 %s17, %s36
    %s66 = ssub.s32 %s19, %s28
    %s67 = sor.u32 %s65, %s66
    %p68 = scmp.eq.s32.totalorder %s67, 0
    %s70 = sadd.s32 %s69, 1
    %s71 = scalar_select %p68, %s69, %s70
    %p74 = pneg %p68
    %p75 = scmp.eq.s32.totalorder %s10, 1
    %p76 = por %p74, %p75
    %p77 = scmp.ne.s32.totalorder %s69, %s72
    %p78 = scmp.eq.s32.totalorder %s10, 0
    %p79 = por %p77, %p78
    %p80 = scmp.ne.s32.totalorder %s69, %s72
    %p81 = scmp.eq.s32.totalorder %s15, 1
    %p82 = por %p80, %p81
    %p83 = scmp.ne.s32.totalorder %s72, %s73
    %p84 = scmp.eq.s32.totalorder %s15, 0
    %p85 = por %p83, %p84
    %p86 = scmp.ne.s32.totalorder %s72, %s73
    %p87 = scmp.eq.s32.totalorder %s16, 1
    %p88 = por %p86, %p87
    %p90 = scmp.ne.s32.totalorder %s73, %s89
    %p91 = scmp.eq.s32.totalorder %s16, 0
    %p92 = por %p90, %p91
    %s93 = ssub.s32 %s17, %s36
    %s94 = ssub.s32 %s18, %s32
    %s95 = sor.u32 %s93, %s94
    %p96 = scmp.eq.s32.totalorder %s95, 0
    %s98 = sadd.s32 %s97, 1
    %s99 = scalar_select %p96, %s97, %s98
    %p102 = pneg %p96
    %p103 = scmp.eq.s32.totalorder %s10, 1
    %p104 = por %p102, %p103
    %p105 = scmp.ne.s32.totalorder %s97, %s100
    %p106 = scmp.eq.s32.totalorder %s10, 0
    %p107 = por %p105, %p106
    %p108 = scmp.ne.s32.totalorder %s97, %s100
    %p109 = scmp.eq.s32.totalorder %s15, 1
    %p110 = por %p108, %p109
    %p111 = scmp.ne.s32.totalorder %s100, %s101
    %p112 = scmp.eq.s32.totalorder %s15, 0
    %p113 = por %p111, %p112
    %p114 = scmp.ne.s32.totalorder %s100, %s101
    %p115 = scmp.eq.s32.totalorder %s16, 1
    %p116 = por %p114, %p115
    %p118 = scmp.ne.s32.totalorder %s101, %s117
    %p119 = scmp.eq.s32.totalorder %s16, 0
    %p120 = por %p118, %p119
    %s121 = ssub.s32 %s17, %s36
    %p122 = scmp.eq.s32.totalorder %s121, 0
    %s124 = sadd.s32 %s123, 1
    %s125 = scalar_select %p122, %s123, %s124
    %p128 = pneg %p122
    %p129 = scmp.eq.s32.totalorder %s10, 1
    %p130 = por %p128, %p129
    %p131 = scmp.ne.s32.totalorder %s123, %s126
    %p132 = scmp.eq.s32.totalorder %s10, 0
    %p133 = por %p131, %p132
    %p134 = scmp.ne.s32.totalorder %s123, %s126
    %p135 = scmp.eq.s32.totalorder %s15, 1
    %p136 = por %p134, %p135
    %p137 = scmp.ne.s32.totalorder %s126, %s127
    %p138 = scmp.eq.s32.totalorder %s15, 0
    %p139 = por %p137, %p138
    %p140 = scmp.ne.s32.totalorder %s126, %s127
    %p141 = scmp.eq.s32.totalorder %s16, 1
    %p142 = por %p140, %p141
    %p144 = scmp.ne.s32.totalorder %s127, %s143
    %p145 = scmp.eq.s32.totalorder %s16, 0
    %p146 = por %p144, %p145
    %p147 = scmp.le.s32.totalorder 1, %s10
    %p148 = scmp.lt.s32.totalorder %s10, 3
    %p149 = pnand %p147, %p148
    %p150 = pneg %p149
    // Predicated region
    $region9: #{chamfer_distance.1} parent=5 // pred_check
      _
    $region10: #{chamfer_distance.1} parent=5 // pred_check_branch
      %152 = sbr.rel (%p149) target = $region12
    $region11: #{chamfer_distance.1} parent=5 // pred_region
      %s153 = ssub.s32 %s10, 1
    $region12: #{chamfer_distance.1} parent=5 // pred_fallthru
      _
    %p154 = scmp.lt.s32.totalorder %s10, 2
    // Predicated region
    $region13: #{chamfer_distance.1} parent=5 // pred_check
      %p155 = pneg %p154
    $region14: #{chamfer_distance.1} parent=5 // pred_check_branch
      %157 = sbr.rel (%p155) target = $region16
    $region15: #{chamfer_distance.1} parent=5 // pred_region
      // Predicated region
      $region17: #{chamfer_distance.1} parent=15 // pred_check
        %p158 = pneg %p51
      $region18: #{chamfer_distance.1} parent=15 // pred_check_branch
        %160 = sbr.rel (%p158) target = $region20
      $region19: #{chamfer_distance.1} parent=15 // pred_region
        %s161 = smul.u32 16, %s18
        %p162 = scmp.lt.s32.totalorder %s17, 1
        %s163 = scalar_select %p162, %s17, 1
        %p164 = scmp.lt.s32.totalorder %s161, 15
        %s165 = scalar_select %p164, %s161, 15
        %s166 = smul.addr %s163, 16
        %s167 = sadd.s32 %s165, %s166
        %s168 = smul.addr %s167, 8
        %s169 = scalar_lea.vmem %s0, %s168
        %s170 = smul.u32 16, %s18
      $region20: #{chamfer_distance.1} parent=15 // pred_fallthru
        _
      // Predicated region
      $region21: #{chamfer_distance.1} parent=15 // pred_check
        %p171 = pneg %p79
      $region22: #{chamfer_distance.1} parent=15 // pred_check_branch
        %173 = sbr.rel (%p171) target = $region24
      $region23: #{chamfer_distance.1} parent=15 // pred_region
        %p174 = scmp.lt.s32.totalorder %s17, 1
        %s175 = scalar_select %p174, %s17, 1
        %p176 = scmp.lt.s32.totalorder %s19, 0
        %s177 = scalar_select %p176, %s19, 0
        %s178 = sadd.s32 %s177, %s175
        %s179 = smul.addr %s178, 8
        %s180 = scalar_lea.vmem %s1, %s179
      $region24: #{chamfer_distance.1} parent=15 // pred_fallthru
        _
    $region16: #{chamfer_distance.1} parent=5 // pred_fallthru
      _
    %p181 = scmp.le.s32.totalorder 1, %s10
    %p182 = scmp.lt.s32.totalorder %s10, 3
    %p183 = pnand %p181, %p182
    %p184 = pneg %p183
    // Predicated region
    $region25: #{chamfer_distance.1} parent=5 // pred_check
      _
    $region26: #{chamfer_distance.1} parent=5 // pred_check_branch
      %186 = sbr.rel (%p183) target = $region28
    $region27: #{chamfer_distance.1} parent=5 // pred_region
      %s187 = ssub.s32 %s10, 1
      %s188 = smul.u32 16, %s21
      %p189 = scmp.lt.s32.totalorder %s20, 1
      %s190 = scalar_select %p189, %s20, 1
      %p191 = scmp.lt.s32.totalorder %s188, 15
      %s192 = scalar_select %p191, %s188, 15
      %s193 = smul.addr %s190, 16
      %s194 = sadd.s32 %s192, %s193
      %s195 = smul.addr %s194, 8
      %s196 = scalar_lea.vmem %s0, %s195
      %p197 = pneg %p57
      %p198 = pneg %p54
      %p199 = scmp.lt.s32.totalorder %s20, 1
      %s200 = scalar_select %p199, %s20, 1
      %p201 = scmp.lt.s32.totalorder %s22, 0
      %s202 = scalar_select %p201, %s22, 0
      %s203 = sadd.s32 %s202, %s200
      %s204 = smul.addr %s203, 8
      %s205 = scalar_lea.vmem %s1, %s204
      %p206 = pneg %p85
      %p207 = pneg %p82
      %p208 = pneg %p113
      %p209 = pneg %p110
      %p210 = scmp.lt.s32.totalorder %s20, 1
      %s211 = scalar_select %p210, %s20, 1
      %p212 = scmp.lt.s32.totalorder %s21, 0
      %s213 = scalar_select %p212, %s21, 0
      %s214 = sadd.s32 %s213, %s211
      %s215 = scalar_lea.vmem %s2, %s214
      %p216 = pneg %p139
      %p217 = pneg %p136
      %p218 = scmp.lt.s32.totalorder %s20, 1
      %s219 = scalar_select %p218, %s20, 1
      %s220 = scalar_lea.vmem %s3, %s219
      %s221 = smul.u32 16, %s21
      %p222 = scmp.lt.s32.totalorder %s20, 1
      %s223 = scalar_select %p222, %s20, 1
      %p224 = scmp.lt.s32.totalorder %s221, 15
      %s225 = scalar_select %p224, %s221, 15
      %s226 = smul.addr %s223, 16
      %s227 = sadd.s32 %s225, %s226
      %s228 = smul.addr %s227, 8
      %s229 = scalar_lea.vmem %s0, %s228
      %s230 = smul.u32 16, %s21
      %p231 = scmp.lt.s32.totalorder %s20, 1
      %s232 = scalar_select %p231, %s20, 1
      %p233 = scmp.lt.s32.totalorder %s22, 0
      %s234 = scalar_select %p233, %s22, 0
      %s235 = sadd.s32 %s234, %s232
      %s236 = smul.addr %s235, 8
      %s237 = scalar_lea.vmem %s1, %s236
      %p238 = scmp.lt.s32.totalorder %s20, 1
      %s239 = scalar_select %p238, %s20, 1
      %p240 = scmp.lt.s32.totalorder %s21, 0
      %s241 = scalar_select %p240, %s21, 0
      %s242 = sadd.s32 %s241, %s239
      %s243 = scalar_lea.vmem %s2, %s242
      %p244 = scmp.lt.s32.totalorder %s20, 1
      %s245 = scalar_select %p244, %s20, 1
      %s246 = scalar_lea.vmem %s3, %s245
      %v247 = vld [vmem:[%s229] sm:$0xff]
      %v248 = vld [vmem:[%s229 + $0x8] sm:$0xff]
      %v249 = vld [vmem:[%s229 + $0x10] sm:$0xff]
      %v250 = vld [vmem:[%s229 + $0x18] sm:$0xff]
      %v251 = vld [vmem:[%s229 + $0x20] sm:$0xff]
      %v252 = vld [vmem:[%s229 + $0x28] sm:$0xff]
      %v253 = vld [vmem:[%s229 + $0x30] sm:$0xff]
      %v254 = vld [vmem:[%s229 + $0x38] sm:$0xff]
      %v255 = vld [vmem:[%s229 + $0x40] sm:$0xff]
      %v256 = vld [vmem:[%s229 + $0x48] sm:$0xff]
      %v257 = vld [vmem:[%s229 + $0x50] sm:$0xff]
      %v258 = vld [vmem:[%s229 + $0x58] sm:$0xff]
      %v259 = vld [vmem:[%s229 + $0x60] sm:$0xff]
      %v260 = vld [vmem:[%s229 + $0x68] sm:$0xff]
      %v261 = vld [vmem:[%s229 + $0x70] sm:$0xff]
      %v262 = vld [vmem:[%s229 + $0x78] sm:$0xff]
      %v263 = vld [vmem:[%s237] sm:$0xff]
      %vm264 = vcmask 64512
      %v266 = vsel %vm264, %v247, 0
      %v269 = vsel %vm264, %v248, 0
      %v272 = vsel %vm264, %v249, 0
      %v275 = vsel %vm264, %v250, 0
      %v278 = vsel %vm264, %v251, 0
      %v281 = vsel %vm264, %v252, 0
      %v284 = vsel %vm264, %v253, 0
      %v287 = vsel %vm264, %v254, 0
      %v290 = vsel %vm264, %v255, 0
      %v293 = vsel %vm264, %v256, 0
      %v296 = vsel %vm264, %v257, 0
      %v299 = vsel %vm264, %v258, 0
      %v302 = vsel %vm264, %v259, 0
      %v305 = vsel %vm264, %v260, 0
      %v308 = vsel %vm264, %v261, 0
      %v311 = vsel %vm264, %v262, 0
      %313 = vmatprep.subr.mxu0 0.0
      %314 = vmatpush1.msra.mxu0 0.0
      %315 = vmatprep.subr.mxu0 0.0
      %316 = vmatpush1.msra.mxu0 0.0
      %317 = vmatprep.subr.mxu0 0.0
      %318 = vmatpush1.msra.mxu0 0.0
      %319 = vmatprep.subr.mxu0 0.0
      %320 = vmatpush1.msra.mxu0 0.0
      %321 = vmatprep.subr.mxu0 0.0
      %322 = vmatpush1.msra.mxu0 0.0
      %323 = vmatprep.subr.mxu0 0.0
      %324 = vmatpush1.msra.mxu0 0.0
      %325 = vmatprep.subr.mxu0 0.0
      %326 = vmatpush1.msra.mxu0 0.0
      %327 = vmatprep.subr.mxu0 0.0
      %328 = vmatpush1.msra.mxu0 0.0
      %329 = vmatprep.subr.mxu0 0.0
      %330 = vmatpush1.msra.mxu0 0.0
      %331 = vmatprep.subr.mxu0 0.0
      %332 = vmatpush1.msra.mxu0 0.0
      %333 = vmatprep.subr.mxu0 0.0
      %334 = vmatpush1.msra.mxu0 0.0
      %335 = vmatprep.subr.mxu0 0.0
      %336 = vmatpush1.msra.mxu0 0.0
      %337 = vmatprep.subr.mxu0 0.0
      %338 = vmatpush1.msra.mxu0 0.0
      %339 = vmatprep.subr.mxu0 0.0
      %340 = vmatpush1.msra.mxu0 0.0
      %341 = vmatprep.subr.mxu0 0.0
      %342 = vmatpush1.msra.mxu0 0.0
      %343 = vmatprep.subr.mxu0 0.0
      %344 = vmatpush1.msra.mxu0 %v263
      %345 = vmatprep.subr.mxu0 0.0
      %346 = vmatpush2.msra.mxu0 0.0
      %347 = vmatprep.subr.mxu0 0.0
      %348 = vmatpush2.msra.mxu0 0.0
      %349 = vmatprep.subr.mxu0 0.0
      %350 = vmatpush2.msra.mxu0 0.0
      %351 = vmatprep.subr.mxu0 0.0
      %352 = vmatpush2.msra.mxu0 0.0
      %353 = vmatprep.subr.mxu0 0.0
      %354 = vmatpush2.msra.mxu0 0.0
      %355 = vmatprep.subr.mxu0 0.0
      %356 = vmatpush2.msra.mxu0 0.0
      %357 = vmatprep.subr.mxu0 0.0
      %358 = vmatpush2.msra.mxu0 0.0
      %359 = vmatprep.subr.mxu0 0.0
      %360 = vmatpush2.msra.mxu0 0.0
      %361 = vmatprep.subr.mxu0 0.0
      %362 = vmatpush2.msra.mxu0 0.0
      %363 = vmatprep.subr.mxu0 0.0
      %364 = vmatpush2.msra.mxu0 0.0
      %365 = vmatprep.subr.mxu0 0.0
      %366 = vmatpush2.msra.mxu0 0.0
      %367 = vmatprep.subr.mxu0 0.0
      %368 = vmatpush2.msra.mxu0 0.0
      %369 = vmatprep.subr.mxu0 0.0
      %370 = vmatpush2.msra.mxu0 0.0
      %371 = vmatprep.subr.mxu0 0.0
      %372 = vmatpush2.msra.mxu0 0.0
      %373 = vmatprep.subr.mxu0 0.0
      %374 = vmatpush2.msra.mxu0 0.0
      %375 = vmatprep.subr.mxu0 0.0
      %376 = vmatpush2.msra.mxu0 0.0
      %377 = vmatprep.mubr.f32.mxu0 0.0
      %378 = vmatmul.mubr.f32.gmra.mxu0 %v266
      %v379 = vpop.f32.mrf.mxu0
      %v380 = vadd.f32 0.0, %v379
      %v381 = vpop.f32.mrf.mxu0
      %382 = vmatprep.mubr.f32.mxu0 0.0
      %383 = vmatmul.mubr.f32.gmra.mxu0 %v269
      %v384 = vpop.f32.mrf.mxu0
      %v385 = vadd.f32 0.0, %v384
      %v386 = vpop.f32.mrf.mxu0
      %387 = vmatprep.mubr.f32.mxu0 0.0
      %388 = vmatmul.mubr.f32.gmra.mxu0 %v272
      %v389 = vpop.f32.mrf.mxu0
      %v390 = vadd.f32 0.0, %v389
      %v391 = vpop.f32.mrf.mxu0
      %392 = vmatprep.mubr.f32.mxu0 0.0
      %393 = vmatmul.mubr.f32.gmra.mxu0 %v275
      %v394 = vpop.f32.mrf.mxu0
      %v395 = vadd.f32 0.0, %v394
      %v396 = vpop.f32.mrf.mxu0
      %397 = vmatprep.mubr.f32.mxu0 0.0
      %398 = vmatmul.mubr.f32.gmra.mxu0 %v278
      %v399 = vpop.f32.mrf.mxu0
      %v400 = vadd.f32 0.0, %v399
      %v401 = vpop.f32.mrf.mxu0
      %402 = vmatprep.mubr.f32.mxu0 0.0
      %403 = vmatmul.mubr.f32.gmra.mxu0 %v281
      %v404 = vpop.f32.mrf.mxu0
      %v405 = vadd.f32 0.0, %v404
      %v406 = vpop.f32.mrf.mxu0
      %407 = vmatprep.mubr.f32.mxu0 0.0
      %408 = vmatmul.mubr.f32.gmra.mxu0 %v284
      %v409 = vpop.f32.mrf.mxu0
      %v410 = vadd.f32 0.0, %v409
      %v411 = vpop.f32.mrf.mxu0
      %412 = vmatprep.mubr.f32.mxu0 0.0
      %413 = vmatmul.mubr.f32.gmra.mxu0 %v287
      %v414 = vpop.f32.mrf.mxu0
      %v415 = vadd.f32 0.0, %v414
      %v416 = vpop.f32.mrf.mxu0
      %417 = vmatprep.mubr.f32.mxu0 0.0
      %418 = vmatmul.mubr.f32.gmra.mxu0 %v290
      %v419 = vpop.f32.mrf.mxu0
      %v420 = vadd.f32 0.0, %v419
      %v421 = vpop.f32.mrf.mxu0
      %422 = vmatprep.mubr.f32.mxu0 0.0
      %423 = vmatmul.mubr.f32.gmra.mxu0 %v293
      %v424 = vpop.f32.mrf.mxu0
      %v425 = vadd.f32 0.0, %v424
      %v426 = vpop.f32.mrf.mxu0
      %427 = vmatprep.mubr.f32.mxu0 0.0
      %428 = vmatmul.mubr.f32.gmra.mxu0 %v296
      %v429 = vpop.f32.mrf.mxu0
      %v430 = vadd.f32 0.0, %v429
      %v431 = vpop.f32.mrf.mxu0
      %432 = vmatprep.mubr.f32.mxu0 0.0
      %433 = vmatmul.mubr.f32.gmra.mxu0 %v299
      %v434 = vpop.f32.mrf.mxu0
      %v435 = vadd.f32 0.0, %v434
      %v436 = vpop.f32.mrf.mxu0
      %437 = vmatprep.mubr.f32.mxu0 0.0
      %438 = vmatmul.mubr.f32.gmra.mxu0 %v302
      %v439 = vpop.f32.mrf.mxu0
      %v440 = vadd.f32 0.0, %v439
      %v441 = vpop.f32.mrf.mxu0
      %442 = vmatprep.mubr.f32.mxu0 0.0
      %443 = vmatmul.mubr.f32.gmra.mxu0 %v305
      %v444 = vpop.f32.mrf.mxu0
      %v445 = vadd.f32 0.0, %v444
      %v446 = vpop.f32.mrf.mxu0
      %447 = vmatprep.mubr.f32.mxu0 0.0
      %448 = vmatmul.mubr.f32.gmra.mxu0 %v308
      %v449 = vpop.f32.mrf.mxu0
      %v450 = vadd.f32 0.0, %v449
      %v451 = vpop.f32.mrf.mxu0
      %452 = vmatprep.mubr.f32.mxu0 0.0
      %453 = vmatmul.mubr.f32.gmra.mxu0 %v311
      %v454 = vpop.f32.mrf.mxu0
      %v455 = vadd.f32 0.0, %v454
      %v456 = vpop.f32.mrf.mxu0
      %457 = vdwg.mxu0
      %v458 = vmax.f32 %v380, 0.0
      %v459 = vmax.f32 %v385, 0.0
      %v460 = vmax.f32 %v390, 0.0
      %v461 = vmax.f32 %v395, 0.0
      %v462 = vmax.f32 %v400, 0.0
      %v463 = vmax.f32 %v405, 0.0
      %v464 = vmax.f32 %v410, 0.0
      %v465 = vmax.f32 %v415, 0.0
      %v466 = vmax.f32 %v420, 0.0
      %v467 = vmax.f32 %v425, 0.0
      %v468 = vmax.f32 %v430, 0.0
      %v469 = vmax.f32 %v435, 0.0
      %v470 = vmax.f32 %v440, 0.0
      %v471 = vmax.f32 %v445, 0.0
      %v472 = vmax.f32 %v450, 0.0
      %v473 = vmax.f32 %v455, 0.0
      %p474 = scmp.eq.s32.totalorder %s22, 0
      // Predicated region
      $region29: #{chamfer_distance.1} parent=27 // pred_check
        %p475 = pneg %p474
      $region30: #{chamfer_distance.1} parent=27 // pred_check_branch
        %477 = sbr.rel (%p475) target = $region32
      $region31: #{chamfer_distance.1} parent=27 // pred_region
        %478 = vst [vmem:[%s243] sm:$0x1] inf
      $region32: #{chamfer_distance.1} parent=27 // pred_fallthru
        _
      %v479 = vld [vmem:[%s243] sm:$0x1]
      %480 = vmin.xlane.f32.xlu0 %v458
      %v481 = vpop.xlane.xlu0 %480
      %482 = vmin.xlane.f32.xlu0 %v459
      %v483 = vpop.xlane.xlu0 %482
      %484 = vmin.xlane.f32.xlu0 %v460
      %v485 = vpop.xlane.xlu0 %484
      %486 = vmin.xlane.f32.xlu0 %v461
      %v487 = vpop.xlane.xlu0 %486
      %488 = vmin.xlane.f32.xlu0 %v462
      %v489 = vpop.xlane.xlu0 %488
      %490 = vmin.xlane.f32.xlu0 %v463
      %v491 = vpop.xlane.xlu0 %490
      %492 = vmin.xlane.f32.xlu0 %v464
      %v493 = vpop.xlane.xlu0 %492
      %494 = vmin.xlane.f32.xlu0 %v465
      %v495 = vpop.xlane.xlu0 %494
      %496 = vmin.xlane.f32.xlu0 %v466
      %v497 = vpop.xlane.xlu0 %496
      %498 = vmin.xlane.f32.xlu0 %v467
      %v499 = vpop.xlane.xlu0 %498
      %500 = vmin.xlane.f32.xlu0 %v468
      %v501 = vpop.xlane.xlu0 %500
      %502 = vmin.xlane.f32.xlu0 %v469
      %v503 = vpop.xlane.xlu0 %502
      %504 = vmin.xlane.f32.xlu0 %v470
      %v505 = vpop.xlane.xlu0 %504
      %506 = vmin.xlane.f32.xlu0 %v471
      %v507 = vpop.xlane.xlu0 %506
      %508 = vmin.xlane.f32.xlu0 %v472
      %v509 = vpop.xlane.xlu0 %508
      %510 = vmin.xlane.f32.xlu0 %v473
      %v511 = vpop.xlane.xlu0 %510
      %v528 = vlaneseq
      %v529 = vshrl.u32 %v528, 7
      %v530 = vsub.s32 0, %v529
      %v531 = vrot.slane %v481, %v530
      %v532 = vlaneseq
      %v533 = vshrl.u32 %v532, 7
      %v534 = vsub.s32 1, %v533
      %v535 = vrot.slane %v481, %v534
      %v536 = vlaneseq
      %v537 = vshrl.u32 %v536, 7
      %v538 = vsub.s32 2, %v537
      %v539 = vrot.slane %v481, %v538
      %v540 = vlaneseq
      %v541 = vshrl.u32 %v540, 7
      %v542 = vsub.s32 3, %v541
      %v543 = vrot.slane %v481, %v542
      %v544 = vlaneseq
      %v545 = vshrl.u32 %v544, 7
      %v546 = vsub.s32 4, %v545
      %v547 = vrot.slane %v481, %v546
      %v548 = vlaneseq
      %v549 = vshrl.u32 %v548, 7
      %v550 = vsub.s32 5, %v549
      %v551 = vrot.slane %v481, %v550
      %v552 = vlaneseq
      %v553 = vshrl.u32 %v552, 7
      %v554 = vsub.s32 6, %v553
      %v555 = vrot.slane %v481, %v554
      %v556 = vlaneseq
      %v557 = vshrl.u32 %v556, 7
      %v558 = vsub.s32 7, %v557
      %v559 = vrot.slane %v481, %v558
      %v560 = vlaneseq
      %v561 = vshrl.u32 %v560, 7
      %v562 = vsub.s32 0, %v561
      %v563 = vrot.slane %v483, %v562
      %v564 = vlaneseq
      %v565 = vshrl.u32 %v564, 7
      %v566 = vsub.s32 1, %v565
      %v567 = vrot.slane %v483, %v566
      %v568 = vlaneseq
      %v569 = vshrl.u32 %v568, 7
      %v570 = vsub.s32 2, %v569
      %v571 = vrot.slane %v483, %v570
      %v572 = vlaneseq
      %v573 = vshrl.u32 %v572, 7
      %v574 = vsub.s32 3, %v573
      %v575 = vrot.slane %v483, %v574
      %v576 = vlaneseq
      %v577 = vshrl.u32 %v576, 7
      %v578 = vsub.s32 4, %v577
      %v579 = vrot.slane %v483, %v578
      %v580 = vlaneseq
      %v581 = vshrl.u32 %v580, 7
      %v582 = vsub.s32 5, %v581
      %v583 = vrot.slane %v483, %v582
      %v584 = vlaneseq
      %v585 = vshrl.u32 %v584, 7
      %v586 = vsub.s32 6, %v585
      %v587 = vrot.slane %v483, %v586
      %v588 = vlaneseq
      %v589 = vshrl.u32 %v588, 7
      %v590 = vsub.s32 7, %v589
      %v591 = vrot.slane %v483, %v590
      %v592 = vlaneseq
      %v593 = vshrl.u32 %v592, 7
      %v594 = vsub.s32 0, %v593
      %v595 = vrot.slane %v485, %v594
      %v596 = vlaneseq
      %v597 = vshrl.u32 %v596, 7
      %v598 = vsub.s32 1, %v597
      %v599 = vrot.slane %v485, %v598
      %v600 = vlaneseq
      %v601 = vshrl.u32 %v600, 7
      %v602 = vsub.s32 2, %v601
      %v603 = vrot.slane %v485, %v602
      %v604 = vlaneseq
      %v605 = vshrl.u32 %v604, 7
      %v606 = vsub.s32 3, %v605
      %v607 = vrot.slane %v485, %v606
      %v608 = vlaneseq
      %v609 = vshrl.u32 %v608, 7
      %v610 = vsub.s32 4, %v609
      %v611 = vrot.slane %v485, %v610
      %v612 = vlaneseq
      %v613 = vshrl.u32 %v612, 7
      %v614 = vsub.s32 5, %v613
      %v615 = vrot.slane %v485, %v614
      %v616 = vlaneseq
      %v617 = vshrl.u32 %v616, 7
      %v618 = vsub.s32 6, %v617
      %v619 = vrot.slane %v485, %v618
      %v620 = vlaneseq
      %v621 = vshrl.u32 %v620, 7
      %v622 = vsub.s32 7, %v621
      %v623 = vrot.slane %v485, %v622
      %v624 = vlaneseq
      %v625 = vshrl.u32 %v624, 7
      %v626 = vsub.s32 0, %v625
      %v627 = vrot.slane %v487, %v626
      %v628 = vlaneseq
      %v629 = vshrl.u32 %v628, 7
      %v630 = vsub.s32 1, %v629
      %v631 = vrot.slane %v487, %v630
      %v632 = vlaneseq
      %v633 = vshrl.u32 %v632, 7
      %v634 = vsub.s32 2, %v633
      %v635 = vrot.slane %v487, %v634
      %v636 = vlaneseq
      %v637 = vshrl.u32 %v636, 7
      %v638 = vsub.s32 3, %v637
      %v639 = vrot.slane %v487, %v638
      %v640 = vlaneseq
      %v641 = vshrl.u32 %v640, 7
      %v642 = vsub.s32 4, %v641
      %v643 = vrot.slane %v487, %v642
      %v644 = vlaneseq
      %v645 = vshrl.u32 %v644, 7
      %v646 = vsub.s32 5, %v645
      %v647 = vrot.slane %v487, %v646
      %v648 = vlaneseq
      %v649 = vshrl.u32 %v648, 7
      %v650 = vsub.s32 6, %v649
      %v651 = vrot.slane %v487, %v650
      %v652 = vlaneseq
      %v653 = vshrl.u32 %v652, 7
      %v654 = vsub.s32 7, %v653
      %v655 = vrot.slane %v487, %v654
      %v656 = vlaneseq
      %v657 = vshrl.u32 %v656, 7
      %v658 = vsub.s32 0, %v657
      %v659 = vrot.slane %v489, %v658
      %v660 = vlaneseq
      %v661 = vshrl.u32 %v660, 7
      %v662 = vsub.s32 1, %v661
      %v663 = vrot.slane %v489, %v662
      %v664 = vlaneseq
      %v665 = vshrl.u32 %v664, 7
      %v666 = vsub.s32 2, %v665
      %v667 = vrot.slane %v489, %v666
      %v668 = vlaneseq
      %v669 = vshrl.u32 %v668, 7
      %v670 = vsub.s32 3, %v669
      %v671 = vrot.slane %v489, %v670
      %v672 = vlaneseq
      %v673 = vshrl.u32 %v672, 7
      %v674 = vsub.s32 4, %v673
      %v675 = vrot.slane %v489, %v674
      %v676 = vlaneseq
      %v677 = vshrl.u32 %v676, 7
      %v678 = vsub.s32 5, %v677
      %v679 = vrot.slane %v489, %v678
      %v680 = vlaneseq
      %v681 = vshrl.u32 %v680, 7
      %v682 = vsub.s32 6, %v681
      %v683 = vrot.slane %v489, %v682
      %v684 = vlaneseq
      %v685 = vshrl.u32 %v684, 7
      %v686 = vsub.s32 7, %v685
      %v687 = vrot.slane %v489, %v686
      %v688 = vlaneseq
      %v689 = vshrl.u32 %v688, 7
      %v690 = vsub.s32 0, %v689
      %v691 = vrot.slane %v491, %v690
      %v692 = vlaneseq
      %v693 = vshrl.u32 %v692, 7
      %v694 = vsub.s32 1, %v693
      %v695 = vrot.slane %v491, %v694
      %v696 = vlaneseq
      %v697 = vshrl.u32 %v696, 7
      %v698 = vsub.s32 2, %v697
      %v699 = vrot.slane %v491, %v698
      %v700 = vlaneseq
      %v701 = vshrl.u32 %v700, 7
      %v702 = vsub.s32 3, %v701
      %v703 = vrot.slane %v491, %v702
      %v704 = vlaneseq
      %v705 = vshrl.u32 %v704, 7
      %v706 = vsub.s32 4, %v705
      %v707 = vrot.slane %v491, %v706
      %v708 = vlaneseq
      %v709 = vshrl.u32 %v708, 7
      %v710 = vsub.s32 5, %v709
      %v711 = vrot.slane %v491, %v710
      %v712 = vlaneseq
      %v713 = vshrl.u32 %v712, 7
      %v714 = vsub.s32 6, %v713
      %v715 = vrot.slane %v491, %v714
      %v716 = vlaneseq
      %v717 = vshrl.u32 %v716, 7
      %v718 = vsub.s32 7, %v717
      %v719 = vrot.slane %v491, %v718
      %v720 = vlaneseq
      %v721 = vshrl.u32 %v720, 7
      %v722 = vsub.s32 0, %v721
      %v723 = vrot.slane %v493, %v722
      %v724 = vlaneseq
      %v725 = vshrl.u32 %v724, 7
      %v726 = vsub.s32 1, %v725
      %v727 = vrot.slane %v493, %v726
      %v728 = vlaneseq
      %v729 = vshrl.u32 %v728, 7
      %v730 = vsub.s32 2, %v729
      %v731 = vrot.slane %v493, %v730
      %v732 = vlaneseq
      %v733 = vshrl.u32 %v732, 7
      %v734 = vsub.s32 3, %v733
      %v735 = vrot.slane %v493, %v734
      %v736 = vlaneseq
      %v737 = vshrl.u32 %v736, 7
      %v738 = vsub.s32 4, %v737
      %v739 = vrot.slane %v493, %v738
      %v740 = vlaneseq
      %v741 = vshrl.u32 %v740, 7
      %v742 = vsub.s32 5, %v741
      %v743 = vrot.slane %v493, %v742
      %v744 = vlaneseq
      %v745 = vshrl.u32 %v744, 7
      %v746 = vsub.s32 6, %v745
      %v747 = vrot.slane %v493, %v746
      %v748 = vlaneseq
      %v749 = vshrl.u32 %v748, 7
      %v750 = vsub.s32 7, %v749
      %v751 = vrot.slane %v493, %v750
      %v752 = vlaneseq
      %v753 = vshrl.u32 %v752, 7
      %v754 = vsub.s32 0, %v753
      %v755 = vrot.slane %v495, %v754
      %v756 = vlaneseq
      %v757 = vshrl.u32 %v756, 7
      %v758 = vsub.s32 1, %v757
      %v759 = vrot.slane %v495, %v758
      %v760 = vlaneseq
      %v761 = vshrl.u32 %v760, 7
      %v762 = vsub.s32 2, %v761
      %v763 = vrot.slane %v495, %v762
      %v764 = vlaneseq
      %v765 = vshrl.u32 %v764, 7
      %v766 = vsub.s32 3, %v765
      %v767 = vrot.slane %v495, %v766
      %v768 = vlaneseq
      %v769 = vshrl.u32 %v768, 7
      %v770 = vsub.s32 4, %v769
      %v771 = vrot.slane %v495, %v770
      %v772 = vlaneseq
      %v773 = vshrl.u32 %v772, 7
      %v774 = vsub.s32 5, %v773
      %v775 = vrot.slane %v495, %v774
      %v776 = vlaneseq
      %v777 = vshrl.u32 %v776, 7
      %v778 = vsub.s32 6, %v777
      %v779 = vrot.slane %v495, %v778
      %v780 = vlaneseq
      %v781 = vshrl.u32 %v780, 7
      %v782 = vsub.s32 7, %v781
      %v783 = vrot.slane %v495, %v782
      %v784 = vlaneseq
      %v785 = vshrl.u32 %v784, 7
      %v786 = vsub.s32 0, %v785
      %v787 = vrot.slane %v497, %v786
      %v788 = vlaneseq
      %v789 = vshrl.u32 %v788, 7
      %v790 = vsub.s32 1, %v789
      %v791 = vrot.slane %v497, %v790
      %v792 = vlaneseq
      %v793 = vshrl.u32 %v792, 7
      %v794 = vsub.s32 2, %v793
      %v795 = vrot.slane %v497, %v794
      %v796 = vlaneseq
      %v797 = vshrl.u32 %v796, 7
      %v798 = vsub.s32 3, %v797
      %v799 = vrot.slane %v497, %v798
      %v800 = vlaneseq
      %v801 = vshrl.u32 %v800, 7
      %v802 = vsub.s32 4, %v801
      %v803 = vrot.slane %v497, %v802
      %v804 = vlaneseq
      %v805 = vshrl.u32 %v804, 7
      %v806 = vsub.s32 5, %v805
      %v807 = vrot.slane %v497, %v806
      %v808 = vlaneseq
      %v809 = vshrl.u32 %v808, 7
      %v810 = vsub.s32 6, %v809
      %v811 = vrot.slane %v497, %v810
      %v812 = vlaneseq
      %v813 = vshrl.u32 %v812, 7
      %v814 = vsub.s32 7, %v813
      %v815 = vrot.slane %v497, %v814
      %v816 = vlaneseq
      %v817 = vshrl.u32 %v816, 7
      %v818 = vsub.s32 0, %v817
      %v819 = vrot.slane %v499, %v818
      %v820 = vlaneseq
      %v821 = vshrl.u32 %v820, 7
      %v822 = vsub.s32 1, %v821
      %v823 = vrot.slane %v499, %v822
      %v824 = vlaneseq
      %v825 = vshrl.u32 %v824, 7
      %v826 = vsub.s32 2, %v825
      %v827 = vrot.slane %v499, %v826
      %v828 = vlaneseq
      %v829 = vshrl.u32 %v828, 7
      %v830 = vsub.s32 3, %v829
      %v831 = vrot.slane %v499, %v830
      %v832 = vlaneseq
      %v833 = vshrl.u32 %v832, 7
      %v834 = vsub.s32 4, %v833
      %v835 = vrot.slane %v499, %v834
      %v836 = vlaneseq
      %v837 = vshrl.u32 %v836, 7
      %v838 = vsub.s32 5, %v837
      %v839 = vrot.slane %v499, %v838
      %v840 = vlaneseq
      %v841 = vshrl.u32 %v840, 7
      %v842 = vsub.s32 6, %v841
      %v843 = vrot.slane %v499, %v842
      %v844 = vlaneseq
      %v845 = vshrl.u32 %v844, 7
      %v846 = vsub.s32 7, %v845
      %v847 = vrot.slane %v499, %v846
      %v848 = vlaneseq
      %v849 = vshrl.u32 %v848, 7
      %v850 = vsub.s32 0, %v849
      %v851 = vrot.slane %v501, %v850
      %v852 = vlaneseq
      %v853 = vshrl.u32 %v852, 7
      %v854 = vsub.s32 1, %v853
      %v855 = vrot.slane %v501, %v854
      %v856 = vlaneseq
      %v857 = vshrl.u32 %v856, 7
      %v858 = vsub.s32 2, %v857
      %v859 = vrot.slane %v501, %v858
      %v860 = vlaneseq
      %v861 = vshrl.u32 %v860, 7
      %v862 = vsub.s32 3, %v861
      %v863 = vrot.slane %v501, %v862
      %v864 = vlaneseq
      %v865 = vshrl.u32 %v864, 7
      %v866 = vsub.s32 4, %v865
      %v867 = vrot.slane %v501, %v866
      %v868 = vlaneseq
      %v869 = vshrl.u32 %v868, 7
      %v870 = vsub.s32 5, %v869
      %v871 = vrot.slane %v501, %v870
      %v872 = vlaneseq
      %v873 = vshrl.u32 %v872, 7
      %v874 = vsub.s32 6, %v873
      %v875 = vrot.slane %v501, %v874
      %v876 = vlaneseq
      %v877 = vshrl.u32 %v876, 7
      %v878 = vsub.s32 7, %v877
      %v879 = vrot.slane %v501, %v878
      %v880 = vlaneseq
      %v881 = vshrl.u32 %v880, 7
      %v882 = vsub.s32 0, %v881
      %v883 = vrot.slane %v503, %v882
      %v884 = vlaneseq
      %v885 = vshrl.u32 %v884, 7
      %v886 = vsub.s32 1, %v885
      %v887 = vrot.slane %v503, %v886
      %v888 = vlaneseq
      %v889 = vshrl.u32 %v888, 7
      %v890 = vsub.s32 2, %v889
      %v891 = vrot.slane %v503, %v890
      %v892 = vlaneseq
      %v893 = vshrl.u32 %v892, 7
      %v894 = vsub.s32 3, %v893
      %v895 = vrot.slane %v503, %v894
      %v896 = vlaneseq
      %v897 = vshrl.u32 %v896, 7
      %v898 = vsub.s32 4, %v897
      %v899 = vrot.slane %v503, %v898
      %v900 = vlaneseq
      %v901 = vshrl.u32 %v900, 7
      %v902 = vsub.s32 5, %v901
      %v903 = vrot.slane %v503, %v902
      %v904 = vlaneseq
      %v905 = vshrl.u32 %v904, 7
      %v906 = vsub.s32 6, %v905
      %v907 = vrot.slane %v503, %v906
      %v908 = vlaneseq
      %v909 = vshrl.u32 %v908, 7
      %v910 = vsub.s32 7, %v909
      %v911 = vrot.slane %v503, %v910
      %v912 = vlaneseq
      %v913 = vshrl.u32 %v912, 7
      %v914 = vsub.s32 0, %v913
      %v915 = vrot.slane %v505, %v914
      %v916 = vlaneseq
      %v917 = vshrl.u32 %v916, 7
      %v918 = vsub.s32 1, %v917
      %v919 = vrot.slane %v505, %v918
      %v920 = vlaneseq
      %v921 = vshrl.u32 %v920, 7
      %v922 = vsub.s32 2, %v921
      %v923 = vrot.slane %v505, %v922
      %v924 = vlaneseq
      %v925 = vshrl.u32 %v924, 7
      %v926 = vsub.s32 3, %v925
      %v927 = vrot.slane %v505, %v926
      %v928 = vlaneseq
      %v929 = vshrl.u32 %v928, 7
      %v930 = vsub.s32 4, %v929
      %v931 = vrot.slane %v505, %v930
      %v932 = vlaneseq
      %v933 = vshrl.u32 %v932, 7
      %v934 = vsub.s32 5, %v933
      %v935 = vrot.slane %v505, %v934
      %v936 = vlaneseq
      %v937 = vshrl.u32 %v936, 7
      %v938 = vsub.s32 6, %v937
      %v939 = vrot.slane %v505, %v938
      %v940 = vlaneseq
      %v941 = vshrl.u32 %v940, 7
      %v942 = vsub.s32 7, %v941
      %v943 = vrot.slane %v505, %v942
      %v944 = vlaneseq
      %v945 = vshrl.u32 %v944, 7
      %v946 = vsub.s32 0, %v945
      %v947 = vrot.slane %v507, %v946
      %v948 = vlaneseq
      %v949 = vshrl.u32 %v948, 7
      %v950 = vsub.s32 1, %v949
      %v951 = vrot.slane %v507, %v950
      %v952 = vlaneseq
      %v953 = vshrl.u32 %v952, 7
      %v954 = vsub.s32 2, %v953
      %v955 = vrot.slane %v507, %v954
      %v956 = vlaneseq
      %v957 = vshrl.u32 %v956, 7
      %v958 = vsub.s32 3, %v957
      %v959 = vrot.slane %v507, %v958
      %v960 = vlaneseq
      %v961 = vshrl.u32 %v960, 7
      %v962 = vsub.s32 4, %v961
      %v963 = vrot.slane %v507, %v962
      %v964 = vlaneseq
      %v965 = vshrl.u32 %v964, 7
      %v966 = vsub.s32 5, %v965
      %v967 = vrot.slane %v507, %v966
      %v968 = vlaneseq
      %v969 = vshrl.u32 %v968, 7
      %v970 = vsub.s32 6, %v969
      %v971 = vrot.slane %v507, %v970
      %v972 = vlaneseq
      %v973 = vshrl.u32 %v972, 7
      %v974 = vsub.s32 7, %v973
      %v975 = vrot.slane %v507, %v974
      %v976 = vlaneseq
      %v977 = vshrl.u32 %v976, 7
      %v978 = vsub.s32 0, %v977
      %v979 = vrot.slane %v509, %v978
      %v980 = vlaneseq
      %v981 = vshrl.u32 %v980, 7
      %v982 = vsub.s32 1, %v981
      %v983 = vrot.slane %v509, %v982
      %v984 = vlaneseq
      %v985 = vshrl.u32 %v984, 7
      %v986 = vsub.s32 2, %v985
      %v987 = vrot.slane %v509, %v986
      %v988 = vlaneseq
      %v989 = vshrl.u32 %v988, 7
      %v990 = vsub.s32 3, %v989
      %v991 = vrot.slane %v509, %v990
      %v992 = vlaneseq
      %v993 = vshrl.u32 %v992, 7
      %v994 = vsub.s32 4, %v993
      %v995 = vrot.slane %v509, %v994
      %v996 = vlaneseq
      %v997 = vshrl.u32 %v996, 7
      %v998 = vsub.s32 5, %v997
      %v999 = vrot.slane %v509, %v998
      %v1000 = vlaneseq
      %v1001 = vshrl.u32 %v1000, 7
      %v1002 = vsub.s32 6, %v1001
      %v1003 = vrot.slane %v509, %v1002
      %v1004 = vlaneseq
      %v1005 = vshrl.u32 %v1004, 7
      %v1006 = vsub.s32 7, %v1005
      %v1007 = vrot.slane %v509, %v1006
      %v1008 = vlaneseq
      %v1009 = vshrl.u32 %v1008, 7
      %v1010 = vsub.s32 0, %v1009
      %v1011 = vrot.slane %v511, %v1010
      %v1012 = vlaneseq
      %v1013 = vshrl.u32 %v1012, 7
      %v1014 = vsub.s32 1, %v1013
      %v1015 = vrot.slane %v511, %v1014
      %v1016 = vlaneseq
      %v1017 = vshrl.u32 %v1016, 7
      %v1018 = vsub.s32 2, %v1017
      %v1019 = vrot.slane %v511, %v1018
      %v1020 = vlaneseq
      %v1021 = vshrl.u32 %v1020, 7
      %v1022 = vsub.s32 3, %v1021
      %v1023 = vrot.slane %v511, %v1022
      %v1024 = vlaneseq
      %v1025 = vshrl.u32 %v1024, 7
      %v1026 = vsub.s32 4, %v1025
      %v1027 = vrot.slane %v511, %v1026
      %v1028 = vlaneseq
      %v1029 = vshrl.u32 %v1028, 7
      %v1030 = vsub.s32 5, %v1029
      %v1031 = vrot.slane %v511, %v1030
      %v1032 = vlaneseq
      %v1033 = vshrl.u32 %v1032, 7
      %v1034 = vsub.s32 6, %v1033
      %v1035 = vrot.slane %v511, %v1034
      %v1036 = vlaneseq
      %v1037 = vshrl.u32 %v1036, 7
      %v1038 = vsub.s32 7, %v1037
      %v1039 = vrot.slane %v511, %v1038
      %v1040 = vcombine.low %v531, %v535
      %v1041 = vcombine.low %v539, %v543
      %v1042 = vcombine.low %v547, %v551
      %v1043 = vcombine.low %v555, %v559
      %v1045 = vunpack.c.l.s4 1966171168
      %v1046 = vunpack.c.0.s8 %v1045
      %v1047 = vlaneseq
      %v1048 = vshrl.u32 %v1047, 7
      %v1049 = vsub.s32 %v1046, %v1048
      %v1050 = vrot.slane %v1040, %v1049
      %v1052 = vunpack.c.l.s4 1966171168
      %v1053 = vunpack.c.0.s8 %v1052
      %v1054 = vlaneseq
      %v1055 = vshrl.u32 %v1054, 7
      %v1056 = vsub.s32 %v1053, %v1055
      %v1057 = vrot.slane %v1041, %v1056
      %v1059 = vunpack.c.l.s4 1966171168
      %v1060 = vunpack.c.0.s8 %v1059
      %v1061 = vlaneseq
      %v1062 = vshrl.u32 %v1061, 7
      %v1063 = vsub.s32 %v1060, %v1062
      %v1064 = vrot.slane %v1042, %v1063
      %v1066 = vunpack.c.l.s4 1966171168
      %v1067 = vunpack.c.0.s8 %v1066
      %v1068 = vlaneseq
      %v1069 = vshrl.u32 %v1068, 7
      %v1070 = vsub.s32 %v1067, %v1069
      %v1071 = vrot.slane %v1043, %v1070
      %v1072 = vcombine.low %v1050, %v1057
      %v1073 = vcombine.low %v1064, %v1071
      %v1075 = vunpack.c.l.s4 1966171168
      %v1076 = vunpack.c.0.s8 %v1075
      %v1077 = vlaneseq
      %v1078 = vshrl.u32 %v1077, 7
      %v1079 = vsub.s32 %v1076, %v1078
      %v1080 = vrot.slane %v1072, %v1079
      %v1082 = vunpack.c.l.s4 1966171168
      %v1083 = vunpack.c.0.s8 %v1082
      %v1084 = vlaneseq
      %v1085 = vshrl.u32 %v1084, 7
      %v1086 = vsub.s32 %v1083, %v1085
      %v1087 = vrot.slane %v1073, %v1086
      %v1088 = vcombine.low %v1080, %v1087
      %v1089 = vcombine.low %v563, %v567
      %v1090 = vcombine.low %v571, %v575
      %v1091 = vcombine.low %v579, %v583
      %v1092 = vcombine.low %v587, %v591
      %v1094 = vunpack.c.l.s4 1966171168
      %v1095 = vunpack.c.0.s8 %v1094
      %v1096 = vlaneseq
      %v1097 = vshrl.u32 %v1096, 7
      %v1098 = vsub.s32 %v1095, %v1097
      %v1099 = vrot.slane %v1089, %v1098
      %v1101 = vunpack.c.l.s4 1966171168
      %v1102 = vunpack.c.0.s8 %v1101
      %v1103 = vlaneseq
      %v1104 = vshrl.u32 %v1103, 7
      %v1105 = vsub.s32 %v1102, %v1104
      %v1106 = vrot.slane %v1090, %v1105
      %v1108 = vunpack.c.l.s4 1966171168
      %v1109 = vunpack.c.0.s8 %v1108
      %v1110 = vlaneseq
      %v1111 = vshrl.u32 %v1110, 7
      %v1112 = vsub.s32 %v1109, %v1111
      %v1113 = vrot.slane %v1091, %v1112
      %v1115 = vunpack.c.l.s4 1966171168
      %v1116 = vunpack.c.0.s8 %v1115
      %v1117 = vlaneseq
      %v1118 = vshrl.u32 %v1117, 7
      %v1119 = vsub.s32 %v1116, %v1118
      %v1120 = vrot.slane %v1092, %v1119
      %v1121 = vcombine.low %v1099, %v1106
      %v1122 = vcombine.low %v1113, %v1120
      %v1124 = vunpack.c.l.s4 1966171168
      %v1125 = vunpack.c.0.s8 %v1124
      %v1126 = vlaneseq
      %v1127 = vshrl.u32 %v1126, 7
      %v1128 = vsub.s32 %v1125, %v1127
      %v1129 = vrot.slane %v1121, %v1128
      %v1131 = vunpack.c.l.s4 1966171168
      %v1132 = vunpack.c.0.s8 %v1131
      %v1133 = vlaneseq
      %v1134 = vshrl.u32 %v1133, 7
      %v1135 = vsub.s32 %v1132, %v1134
      %v1136 = vrot.slane %v1122, %v1135
      %v1137 = vcombine.low %v1129, %v1136
      %v1138 = vcombine.low %v595, %v599
      %v1139 = vcombine.low %v603, %v607
      %v1140 = vcombine.low %v611, %v615
      %v1141 = vcombine.low %v619, %v623
      %v1143 = vunpack.c.l.s4 1966171168
      %v1144 = vunpack.c.0.s8 %v1143
      %v1145 = vlaneseq
      %v1146 = vshrl.u32 %v1145, 7
      %v1147 = vsub.s32 %v1144, %v1146
      %v1148 = vrot.slane %v1138, %v1147
      %v1150 = vunpack.c.l.s4 1966171168
      %v1151 = vunpack.c.0.s8 %v1150
      %v1152 = vlaneseq
      %v1153 = vshrl.u32 %v1152, 7
      %v1154 = vsub.s32 %v1151, %v1153
      %v1155 = vrot.slane %v1139, %v1154
      %v1157 = vunpack.c.l.s4 1966171168
      %v1158 = vunpack.c.0.s8 %v1157
      %v1159 = vlaneseq
      %v1160 = vshrl.u32 %v1159, 7
      %v1161 = vsub.s32 %v1158, %v1160
      %v1162 = vrot.slane %v1140, %v1161
      %v1164 = vunpack.c.l.s4 1966171168
      %v1165 = vunpack.c.0.s8 %v1164
      %v1166 = vlaneseq
      %v1167 = vshrl.u32 %v1166, 7
      %v1168 = vsub.s32 %v1165, %v1167
      %v1169 = vrot.slane %v1141, %v1168
      %v1170 = vcombine.low %v1148, %v1155
      %v1171 = vcombine.low %v1162, %v1169
      %v1173 = vunpack.c.l.s4 1966171168
      %v1174 = vunpack.c.0.s8 %v1173
      %v1175 = vlaneseq
      %v1176 = vshrl.u32 %v1175, 7
      %v1177 = vsub.s32 %v1174, %v1176
      %v1178 = vrot.slane %v1170, %v1177
      %v1180 = vunpack.c.l.s4 1966171168
      %v1181 = vunpack.c.0.s8 %v1180
      %v1182 = vlaneseq
      %v1183 = vshrl.u32 %v1182, 7
      %v1184 = vsub.s32 %v1181, %v1183
      %v1185 = vrot.slane %v1171, %v1184
      %v1186 = vcombine.low %v1178, %v1185
      %v1187 = vcombine.low %v627, %v631
      %v1188 = vcombine.low %v635, %v639
      %v1189 = vcombine.low %v643, %v647
      %v1190 = vcombine.low %v651, %v655
      %v1192 = vunpack.c.l.s4 1966171168
      %v1193 = vunpack.c.0.s8 %v1192
      %v1194 = vlaneseq
      %v1195 = vshrl.u32 %v1194, 7
      %v1196 = vsub.s32 %v1193, %v1195
      %v1197 = vrot.slane %v1187, %v1196
      %v1199 = vunpack.c.l.s4 1966171168
      %v1200 = vunpack.c.0.s8 %v1199
      %v1201 = vlaneseq
      %v1202 = vshrl.u32 %v1201, 7
      %v1203 = vsub.s32 %v1200, %v1202
      %v1204 = vrot.slane %v1188, %v1203
      %v1206 = vunpack.c.l.s4 1966171168
      %v1207 = vunpack.c.0.s8 %v1206
      %v1208 = vlaneseq
      %v1209 = vshrl.u32 %v1208, 7
      %v1210 = vsub.s32 %v1207, %v1209
      %v1211 = vrot.slane %v1189, %v1210
      %v1213 = vunpack.c.l.s4 1966171168
      %v1214 = vunpack.c.0.s8 %v1213
      %v1215 = vlaneseq
      %v1216 = vshrl.u32 %v1215, 7
      %v1217 = vsub.s32 %v1214, %v1216
      %v1218 = vrot.slane %v1190, %v1217
      %v1219 = vcombine.low %v1197, %v1204
      %v1220 = vcombine.low %v1211, %v1218
      %v1222 = vunpack.c.l.s4 1966171168
      %v1223 = vunpack.c.0.s8 %v1222
      %v1224 = vlaneseq
      %v1225 = vshrl.u32 %v1224, 7
      %v1226 = vsub.s32 %v1223, %v1225
      %v1227 = vrot.slane %v1219, %v1226
      %v1229 = vunpack.c.l.s4 1966171168
      %v1230 = vunpack.c.0.s8 %v1229
      %v1231 = vlaneseq
      %v1232 = vshrl.u32 %v1231, 7
      %v1233 = vsub.s32 %v1230, %v1232
      %v1234 = vrot.slane %v1220, %v1233
      %v1235 = vcombine.low %v1227, %v1234
      %v1236 = vcombine.low %v659, %v663
      %v1237 = vcombine.low %v667, %v671
      %v1238 = vcombine.low %v675, %v679
      %v1239 = vcombine.low %v683, %v687
      %v1241 = vunpack.c.l.s4 1966171168
      %v1242 = vunpack.c.0.s8 %v1241
      %v1243 = vlaneseq
      %v1244 = vshrl.u32 %v1243, 7
      %v1245 = vsub.s32 %v1242, %v1244
      %v1246 = vrot.slane %v1236, %v1245
      %v1248 = vunpack.c.l.s4 1966171168
      %v1249 = vunpack.c.0.s8 %v1248
      %v1250 = vlaneseq
      %v1251 = vshrl.u32 %v1250, 7
      %v1252 = vsub.s32 %v1249, %v1251
      %v1253 = vrot.slane %v1237, %v1252
      %v1255 = vunpack.c.l.s4 1966171168
      %v1256 = vunpack.c.0.s8 %v1255
      %v1257 = vlaneseq
      %v1258 = vshrl.u32 %v1257, 7
      %v1259 = vsub.s32 %v1256, %v1258
      %v1260 = vrot.slane %v1238, %v1259
      %v1262 = vunpack.c.l.s4 1966171168
      %v1263 = vunpack.c.0.s8 %v1262
      %v1264 = vlaneseq
      %v1265 = vshrl.u32 %v1264, 7
      %v1266 = vsub.s32 %v1263, %v1265
      %v1267 = vrot.slane %v1239, %v1266
      %v1268 = vcombine.low %v1246, %v1253
      %v1269 = vcombine.low %v1260, %v1267
      %v1271 = vunpack.c.l.s4 1966171168
      %v1272 = vunpack.c.0.s8 %v1271
      %v1273 = vlaneseq
      %v1274 = vshrl.u32 %v1273, 7
      %v1275 = vsub.s32 %v1272, %v1274
      %v1276 = vrot.slane %v1268, %v1275
      %v1278 = vunpack.c.l.s4 1966171168
      %v1279 = vunpack.c.0.s8 %v1278
      %v1280 = vlaneseq
      %v1281 = vshrl.u32 %v1280, 7
      %v1282 = vsub.s32 %v1279, %v1281
      %v1283 = vrot.slane %v1269, %v1282
      %v1284 = vcombine.low %v1276, %v1283
      %v1285 = vcombine.low %v691, %v695
      %v1286 = vcombine.low %v699, %v703
      %v1287 = vcombine.low %v707, %v711
      %v1288 = vcombine.low %v715, %v719
      %v1290 = vunpack.c.l.s4 1966171168
      %v1291 = vunpack.c.0.s8 %v1290
      %v1292 = vlaneseq
      %v1293 = vshrl.u32 %v1292, 7
      %v1294 = vsub.s32 %v1291, %v1293
      %v1295 = vrot.slane %v1285, %v1294
      %v1297 = vunpack.c.l.s4 1966171168
      %v1298 = vunpack.c.0.s8 %v1297
      %v1299 = vlaneseq
      %v1300 = vshrl.u32 %v1299, 7
      %v1301 = vsub.s32 %v1298, %v1300
      %v1302 = vrot.slane %v1286, %v1301
      %v1304 = vunpack.c.l.s4 1966171168
      %v1305 = vunpack.c.0.s8 %v1304
      %v1306 = vlaneseq
      %v1307 = vshrl.u32 %v1306, 7
      %v1308 = vsub.s32 %v1305, %v1307
      %v1309 = vrot.slane %v1287, %v1308
      %v1311 = vunpack.c.l.s4 1966171168
      %v1312 = vunpack.c.0.s8 %v1311
      %v1313 = vlaneseq
      %v1314 = vshrl.u32 %v1313, 7
      %v1315 = vsub.s32 %v1312, %v1314
      %v1316 = vrot.slane %v1288, %v1315
      %v1317 = vcombine.low %v1295, %v1302
      %v1318 = vcombine.low %v1309, %v1316
      %v1320 = vunpack.c.l.s4 1966171168
      %v1321 = vunpack.c.0.s8 %v1320
      %v1322 = vlaneseq
      %v1323 = vshrl.u32 %v1322, 7
      %v1324 = vsub.s32 %v1321, %v1323
      %v1325 = vrot.slane %v1317, %v1324
      %v1327 = vunpack.c.l.s4 1966171168
      %v1328 = vunpack.c.0.s8 %v1327
      %v1329 = vlaneseq
      %v1330 = vshrl.u32 %v1329, 7
      %v1331 = vsub.s32 %v1328, %v1330
      %v1332 = vrot.slane %v1318, %v1331
      %v1333 = vcombine.low %v1325, %v1332
      %v1334 = vcombine.low %v723, %v727
      %v1335 = vcombine.low %v731, %v735
      %v1336 = vcombine.low %v739, %v743
      %v1337 = vcombine.low %v747, %v751
      %v1339 = vunpack.c.l.s4 1966171168
      %v1340 = vunpack.c.0.s8 %v1339
      %v1341 = vlaneseq
      %v1342 = vshrl.u32 %v1341, 7
      %v1343 = vsub.s32 %v1340, %v1342
      %v1344 = vrot.slane %v1334, %v1343
      %v1346 = vunpack.c.l.s4 1966171168
      %v1347 = vunpack.c.0.s8 %v1346
      %v1348 = vlaneseq
      %v1349 = vshrl.u32 %v1348, 7
      %v1350 = vsub.s32 %v1347, %v1349
      %v1351 = vrot.slane %v1335, %v1350
      %v1353 = vunpack.c.l.s4 1966171168
      %v1354 = vunpack.c.0.s8 %v1353
      %v1355 = vlaneseq
      %v1356 = vshrl.u32 %v1355, 7
      %v1357 = vsub.s32 %v1354, %v1356
      %v1358 = vrot.slane %v1336, %v1357
      %v1360 = vunpack.c.l.s4 1966171168
      %v1361 = vunpack.c.0.s8 %v1360
      %v1362 = vlaneseq
      %v1363 = vshrl.u32 %v1362, 7
      %v1364 = vsub.s32 %v1361, %v1363
      %v1365 = vrot.slane %v1337, %v1364
      %v1366 = vcombine.low %v1344, %v1351
      %v1367 = vcombine.low %v1358, %v1365
      %v1369 = vunpack.c.l.s4 1966171168
      %v1370 = vunpack.c.0.s8 %v1369
      %v1371 = vlaneseq
      %v1372 = vshrl.u32 %v1371, 7
      %v1373 = vsub.s32 %v1370, %v1372
      %v1374 = vrot.slane %v1366, %v1373
      %v1376 = vunpack.c.l.s4 1966171168
      %v1377 = vunpack.c.0.s8 %v1376
      %v1378 = vlaneseq
      %v1379 = vshrl.u32 %v1378, 7
      %v1380 = vsub.s32 %v1377, %v1379
      %v1381 = vrot.slane %v1367, %v1380
      %v1382 = vcombine.low %v1374, %v1381
      %v1383 = vcombine.low %v755, %v759
      %v1384 = vcombine.low %v763, %v767
      %v1385 = vcombine.low %v771, %v775
      %v1386 = vcombine.low %v779, %v783
      %v1388 = vunpack.c.l.s4 1966171168
      %v1389 = vunpack.c.0.s8 %v1388
      %v1390 = vlaneseq
      %v1391 = vshrl.u32 %v1390, 7
      %v1392 = vsub.s32 %v1389, %v1391
      %v1393 = vrot.slane %v1383, %v1392
      %v1395 = vunpack.c.l.s4 1966171168
      %v1396 = vunpack.c.0.s8 %v1395
      %v1397 = vlaneseq
      %v1398 = vshrl.u32 %v1397, 7
      %v1399 = vsub.s32 %v1396, %v1398
      %v1400 = vrot.slane %v1384, %v1399
      %v1402 = vunpack.c.l.s4 1966171168
      %v1403 = vunpack.c.0.s8 %v1402
      %v1404 = vlaneseq
      %v1405 = vshrl.u32 %v1404, 7
      %v1406 = vsub.s32 %v1403, %v1405
      %v1407 = vrot.slane %v1385, %v1406
      %v1409 = vunpack.c.l.s4 1966171168
      %v1410 = vunpack.c.0.s8 %v1409
      %v1411 = vlaneseq
      %v1412 = vshrl.u32 %v1411, 7
      %v1413 = vsub.s32 %v1410, %v1412
      %v1414 = vrot.slane %v1386, %v1413
      %v1415 = vcombine.low %v1393, %v1400
      %v1416 = vcombine.low %v1407, %v1414
      %v1418 = vunpack.c.l.s4 1966171168
      %v1419 = vunpack.c.0.s8 %v1418
      %v1420 = vlaneseq
      %v1421 = vshrl.u32 %v1420, 7
      %v1422 = vsub.s32 %v1419, %v1421
      %v1423 = vrot.slane %v1415, %v1422
      %v1425 = vunpack.c.l.s4 1966171168
      %v1426 = vunpack.c.0.s8 %v1425
      %v1427 = vlaneseq
      %v1428 = vshrl.u32 %v1427, 7
      %v1429 = vsub.s32 %v1426, %v1428
      %v1430 = vrot.slane %v1416, %v1429
      %v1431 = vcombine.low %v1423, %v1430
      %v1432 = vcombine.low %v787, %v791
      %v1433 = vcombine.low %v795, %v799
      %v1434 = vcombine.low %v803, %v807
      %v1435 = vcombine.low %v811, %v815
      %v1437 = vunpack.c.l.s4 1966171168
      %v1438 = vunpack.c.0.s8 %v1437
      %v1439 = vlaneseq
      %v1440 = vshrl.u32 %v1439, 7
      %v1441 = vsub.s32 %v1438, %v1440
      %v1442 = vrot.slane %v1432, %v1441
      %v1444 = vunpack.c.l.s4 1966171168
      %v1445 = vunpack.c.0.s8 %v1444
      %v1446 = vlaneseq
      %v1447 = vshrl.u32 %v1446, 7
      %v1448 = vsub.s32 %v1445, %v1447
      %v1449 = vrot.slane %v1433, %v1448
      %v1451 = vunpack.c.l.s4 1966171168
      %v1452 = vunpack.c.0.s8 %v1451
      %v1453 = vlaneseq
      %v1454 = vshrl.u32 %v1453, 7
      %v1455 = vsub.s32 %v1452, %v1454
      %v1456 = vrot.slane %v1434, %v1455
      %v1458 = vunpack.c.l.s4 1966171168
      %v1459 = vunpack.c.0.s8 %v1458
      %v1460 = vlaneseq
      %v1461 = vshrl.u32 %v1460, 7
      %v1462 = vsub.s32 %v1459, %v1461
      %v1463 = vrot.slane %v1435, %v1462
      %v1464 = vcombine.low %v1442, %v1449
      %v1465 = vcombine.low %v1456, %v1463
      %v1467 = vunpack.c.l.s4 1966171168
      %v1468 = vunpack.c.0.s8 %v1467
      %v1469 = vlaneseq
      %v1470 = vshrl.u32 %v1469, 7
      %v1471 = vsub.s32 %v1468, %v1470
      %v1472 = vrot.slane %v1464, %v1471
      %v1474 = vunpack.c.l.s4 1966171168
      %v1475 = vunpack.c.0.s8 %v1474
      %v1476 = vlaneseq
      %v1477 = vshrl.u32 %v1476, 7
      %v1478 = vsub.s32 %v1475, %v1477
      %v1479 = vrot.slane %v1465, %v1478
      %v1480 = vcombine.low %v1472, %v1479
      %v1481 = vcombine.low %v819, %v823
      %v1482 = vcombine.low %v827, %v831
      %v1483 = vcombine.low %v835, %v839
      %v1484 = vcombine.low %v843, %v847
      %v1486 = vunpack.c.l.s4 1966171168
      %v1487 = vunpack.c.0.s8 %v1486
      %v1488 = vlaneseq
      %v1489 = vshrl.u32 %v1488, 7
      %v1490 = vsub.s32 %v1487, %v1489
      %v1491 = vrot.slane %v1481, %v1490
      %v1493 = vunpack.c.l.s4 1966171168
      %v1494 = vunpack.c.0.s8 %v1493
      %v1495 = vlaneseq
      %v1496 = vshrl.u32 %v1495, 7
      %v1497 = vsub.s32 %v1494, %v1496
      %v1498 = vrot.slane %v1482, %v1497
      %v1500 = vunpack.c.l.s4 1966171168
      %v1501 = vunpack.c.0.s8 %v1500
      %v1502 = vlaneseq
      %v1503 = vshrl.u32 %v1502, 7
      %v1504 = vsub.s32 %v1501, %v1503
      %v1505 = vrot.slane %v1483, %v1504
      %v1507 = vunpack.c.l.s4 1966171168
      %v1508 = vunpack.c.0.s8 %v1507
      %v1509 = vlaneseq
      %v1510 = vshrl.u32 %v1509, 7
      %v1511 = vsub.s32 %v1508, %v1510
      %v1512 = vrot.slane %v1484, %v1511
      %v1513 = vcombine.low %v1491, %v1498
      %v1514 = vcombine.low %v1505, %v1512
      %v1516 = vunpack.c.l.s4 1966171168
      %v1517 = vunpack.c.0.s8 %v1516
      %v1518 = vlaneseq
      %v1519 = vshrl.u32 %v1518, 7
      %v1520 = vsub.s32 %v1517, %v1519
      %v1521 = vrot.slane %v1513, %v1520
      %v1523 = vunpack.c.l.s4 1966171168
      %v1524 = vunpack.c.0.s8 %v1523
      %v1525 = vlaneseq
      %v1526 = vshrl.u32 %v1525, 7
      %v1527 = vsub.s32 %v1524, %v1526
      %v1528 = vrot.slane %v1514, %v1527
      %v1529 = vcombine.low %v1521, %v1528
      %v1530 = vcombine.low %v851, %v855
      %v1531 = vcombine.low %v859, %v863
      %v1532 = vcombine.low %v867, %v871
      %v1533 = vcombine.low %v875, %v879
      %v1535 = vunpack.c.l.s4 1966171168
      %v1536 = vunpack.c.0.s8 %v1535
      %v1537 = vlaneseq
      %v1538 = vshrl.u32 %v1537, 7
      %v1539 = vsub.s32 %v1536, %v1538
      %v1540 = vrot.slane %v1530, %v1539
      %v1542 = vunpack.c.l.s4 1966171168
      %v1543 = vunpack.c.0.s8 %v1542
      %v1544 = vlaneseq
      %v1545 = vshrl.u32 %v1544, 7
      %v1546 = vsub.s32 %v1543, %v1545
      %v1547 = vrot.slane %v1531, %v1546
      %v1549 = vunpack.c.l.s4 1966171168
      %v1550 = vunpack.c.0.s8 %v1549
      %v1551 = vlaneseq
      %v1552 = vshrl.u32 %v1551, 7
      %v1553 = vsub.s32 %v1550, %v1552
      %v1554 = vrot.slane %v1532, %v1553
      %v1556 = vunpack.c.l.s4 1966171168
      %v1557 = vunpack.c.0.s8 %v1556
      %v1558 = vlaneseq
      %v1559 = vshrl.u32 %v1558, 7
      %v1560 = vsub.s32 %v1557, %v1559
      %v1561 = vrot.slane %v1533, %v1560
      %v1562 = vcombine.low %v1540, %v1547
      %v1563 = vcombine.low %v1554, %v1561
      %v1565 = vunpack.c.l.s4 1966171168
      %v1566 = vunpack.c.0.s8 %v1565
      %v1567 = vlaneseq
      %v1568 = vshrl.u32 %v1567, 7
      %v1569 = vsub.s32 %v1566, %v1568
      %v1570 = vrot.slane %v1562, %v1569
      %v1572 = vunpack.c.l.s4 1966171168
      %v1573 = vunpack.c.0.s8 %v1572
      %v1574 = vlaneseq
      %v1575 = vshrl.u32 %v1574, 7
      %v1576 = vsub.s32 %v1573, %v1575
      %v1577 = vrot.slane %v1563, %v1576
      %v1578 = vcombine.low %v1570, %v1577
      %v1579 = vcombine.low %v883, %v887
      %v1580 = vcombine.low %v891, %v895
      %v1581 = vcombine.low %v899, %v903
      %v1582 = vcombine.low %v907, %v911
      %v1584 = vunpack.c.l.s4 1966171168
      %v1585 = vunpack.c.0.s8 %v1584
      %v1586 = vlaneseq
      %v1587 = vshrl.u32 %v1586, 7
      %v1588 = vsub.s32 %v1585, %v1587
      %v1589 = vrot.slane %v1579, %v1588
      %v1591 = vunpack.c.l.s4 1966171168
      %v1592 = vunpack.c.0.s8 %v1591
      %v1593 = vlaneseq
      %v1594 = vshrl.u32 %v1593, 7
      %v1595 = vsub.s32 %v1592, %v1594
      %v1596 = vrot.slane %v1580, %v1595
      %v1598 = vunpack.c.l.s4 1966171168
      %v1599 = vunpack.c.0.s8 %v1598
      %v1600 = vlaneseq
      %v1601 = vshrl.u32 %v1600, 7
      %v1602 = vsub.s32 %v1599, %v1601
      %v1603 = vrot.slane %v1581, %v1602
      %v1605 = vunpack.c.l.s4 1966171168
      %v1606 = vunpack.c.0.s8 %v1605
      %v1607 = vlaneseq
      %v1608 = vshrl.u32 %v1607, 7
      %v1609 = vsub.s32 %v1606, %v1608
      %v1610 = vrot.slane %v1582, %v1609
      %v1611 = vcombine.low %v1589, %v1596
      %v1612 = vcombine.low %v1603, %v1610
      %v1614 = vunpack.c.l.s4 1966171168
      %v1615 = vunpack.c.0.s8 %v1614
      %v1616 = vlaneseq
      %v1617 = vshrl.u32 %v1616, 7
      %v1618 = vsub.s32 %v1615, %v1617
      %v1619 = vrot.slane %v1611, %v1618
      %v1621 = vunpack.c.l.s4 1966171168
      %v1622 = vunpack.c.0.s8 %v1621
      %v1623 = vlaneseq
      %v1624 = vshrl.u32 %v1623, 7
      %v1625 = vsub.s32 %v1622, %v1624
      %v1626 = vrot.slane %v1612, %v1625
      %v1627 = vcombine.low %v1619, %v1626
      %v1628 = vcombine.low %v915, %v919
      %v1629 = vcombine.low %v923, %v927
      %v1630 = vcombine.low %v931, %v935
      %v1631 = vcombine.low %v939, %v943
      %v1633 = vunpack.c.l.s4 1966171168
      %v1634 = vunpack.c.0.s8 %v1633
      %v1635 = vlaneseq
      %v1636 = vshrl.u32 %v1635, 7
      %v1637 = vsub.s32 %v1634, %v1636
      %v1638 = vrot.slane %v1628, %v1637
      %v1640 = vunpack.c.l.s4 1966171168
      %v1641 = vunpack.c.0.s8 %v1640
      %v1642 = vlaneseq
      %v1643 = vshrl.u32 %v1642, 7
      %v1644 = vsub.s32 %v1641, %v1643
      %v1645 = vrot.slane %v1629, %v1644
      %v1647 = vunpack.c.l.s4 1966171168
      %v1648 = vunpack.c.0.s8 %v1647
      %v1649 = vlaneseq
      %v1650 = vshrl.u32 %v1649, 7
      %v1651 = vsub.s32 %v1648, %v1650
      %v1652 = vrot.slane %v1630, %v1651
      %v1654 = vunpack.c.l.s4 1966171168
      %v1655 = vunpack.c.0.s8 %v1654
      %v1656 = vlaneseq
      %v1657 = vshrl.u32 %v1656, 7
      %v1658 = vsub.s32 %v1655, %v1657
      %v1659 = vrot.slane %v1631, %v1658
      %v1660 = vcombine.low %v1638, %v1645
      %v1661 = vcombine.low %v1652, %v1659
      %v1663 = vunpack.c.l.s4 1966171168
      %v1664 = vunpack.c.0.s8 %v1663
      %v1665 = vlaneseq
      %v1666 = vshrl.u32 %v1665, 7
      %v1667 = vsub.s32 %v1664, %v1666
      %v1668 = vrot.slane %v1660, %v1667
      %v1670 = vunpack.c.l.s4 1966171168
      %v1671 = vunpack.c.0.s8 %v1670
      %v1672 = vlaneseq
      %v1673 = vshrl.u32 %v1672, 7
      %v1674 = vsub.s32 %v1671, %v1673
      %v1675 = vrot.slane %v1661, %v1674
      %v1676 = vcombine.low %v1668, %v1675
      %v1677 = vcombine.low %v947, %v951
      %v1678 = vcombine.low %v955, %v959
      %v1679 = vcombine.low %v963, %v967
      %v1680 = vcombine.low %v971, %v975
      %v1682 = vunpack.c.l.s4 1966171168
      %v1683 = vunpack.c.0.s8 %v1682
      %v1684 = vlaneseq
      %v1685 = vshrl.u32 %v1684, 7
      %v1686 = vsub.s32 %v1683, %v1685
      %v1687 = vrot.slane %v1677, %v1686
      %v1689 = vunpack.c.l.s4 1966171168
      %v1690 = vunpack.c.0.s8 %v1689
      %v1691 = vlaneseq
      %v1692 = vshrl.u32 %v1691, 7
      %v1693 = vsub.s32 %v1690, %v1692
      %v1694 = vrot.slane %v1678, %v1693
      %v1696 = vunpack.c.l.s4 1966171168
      %v1697 = vunpack.c.0.s8 %v1696
      %v1698 = vlaneseq
      %v1699 = vshrl.u32 %v1698, 7
      %v1700 = vsub.s32 %v1697, %v1699
      %v1701 = vrot.slane %v1679, %v1700
      %v1703 = vunpack.c.l.s4 1966171168
      %v1704 = vunpack.c.0.s8 %v1703
      %v1705 = vlaneseq
      %v1706 = vshrl.u32 %v1705, 7
      %v1707 = vsub.s32 %v1704, %v1706
      %v1708 = vrot.slane %v1680, %v1707
      %v1709 = vcombine.low %v1687, %v1694
      %v1710 = vcombine.low %v1701, %v1708
      %v1712 = vunpack.c.l.s4 1966171168
      %v1713 = vunpack.c.0.s8 %v1712
      %v1714 = vlaneseq
      %v1715 = vshrl.u32 %v1714, 7
      %v1716 = vsub.s32 %v1713, %v1715
      %v1717 = vrot.slane %v1709, %v1716
      %v1719 = vunpack.c.l.s4 1966171168
      %v1720 = vunpack.c.0.s8 %v1719
      %v1721 = vlaneseq
      %v1722 = vshrl.u32 %v1721, 7
      %v1723 = vsub.s32 %v1720, %v1722
      %v1724 = vrot.slane %v1710, %v1723
      %v1725 = vcombine.low %v1717, %v1724
      %v1726 = vcombine.low %v979, %v983
      %v1727 = vcombine.low %v987, %v991
      %v1728 = vcombine.low %v995, %v999
      %v1729 = vcombine.low %v1003, %v1007
      %v1731 = vunpack.c.l.s4 1966171168
      %v1732 = vunpack.c.0.s8 %v1731
      %v1733 = vlaneseq
      %v1734 = vshrl.u32 %v1733, 7
      %v1735 = vsub.s32 %v1732, %v1734
      %v1736 = vrot.slane %v1726, %v1735
      %v1738 = vunpack.c.l.s4 1966171168
      %v1739 = vunpack.c.0.s8 %v1738
      %v1740 = vlaneseq
      %v1741 = vshrl.u32 %v1740, 7
      %v1742 = vsub.s32 %v1739, %v1741
      %v1743 = vrot.slane %v1727, %v1742
      %v1745 = vunpack.c.l.s4 1966171168
      %v1746 = vunpack.c.0.s8 %v1745
      %v1747 = vlaneseq
      %v1748 = vshrl.u32 %v1747, 7
      %v1749 = vsub.s32 %v1746, %v1748
      %v1750 = vrot.slane %v1728, %v1749
      %v1752 = vunpack.c.l.s4 1966171168
      %v1753 = vunpack.c.0.s8 %v1752
      %v1754 = vlaneseq
      %v1755 = vshrl.u32 %v1754, 7
      %v1756 = vsub.s32 %v1753, %v1755
      %v1757 = vrot.slane %v1729, %v1756
      %v1758 = vcombine.low %v1736, %v1743
      %v1759 = vcombine.low %v1750, %v1757
      %v1761 = vunpack.c.l.s4 1966171168
      %v1762 = vunpack.c.0.s8 %v1761
      %v1763 = vlaneseq
      %v1764 = vshrl.u32 %v1763, 7
      %v1765 = vsub.s32 %v1762, %v1764
      %v1766 = vrot.slane %v1758, %v1765
      %v1768 = vunpack.c.l.s4 1966171168
      %v1769 = vunpack.c.0.s8 %v1768
      %v1770 = vlaneseq
      %v1771 = vshrl.u32 %v1770, 7
      %v1772 = vsub.s32 %v1769, %v1771
      %v1773 = vrot.slane %v1759, %v1772
      %v1774 = vcombine.low %v1766, %v1773
      %v1775 = vcombine.low %v1011, %v1015
      %v1776 = vcombine.low %v1019, %v1023
      %v1777 = vcombine.low %v1027, %v1031
      %v1778 = vcombine.low %v1035, %v1039
      %v1780 = vunpack.c.l.s4 1966171168
      %v1781 = vunpack.c.0.s8 %v1780
      %v1782 = vlaneseq
      %v1783 = vshrl.u32 %v1782, 7
      %v1784 = vsub.s32 %v1781, %v1783
      %v1785 = vrot.slane %v1775, %v1784
      %v1787 = vunpack.c.l.s4 1966171168
      %v1788 = vunpack.c.0.s8 %v1787
      %v1789 = vlaneseq
      %v1790 = vshrl.u32 %v1789, 7
      %v1791 = vsub.s32 %v1788, %v1790
      %v1792 = vrot.slane %v1776, %v1791
      %v1794 = vunpack.c.l.s4 1966171168
      %v1795 = vunpack.c.0.s8 %v1794
      %v1796 = vlaneseq
      %v1797 = vshrl.u32 %v1796, 7
      %v1798 = vsub.s32 %v1795, %v1797
      %v1799 = vrot.slane %v1777, %v1798
      %v1801 = vunpack.c.l.s4 1966171168
      %v1802 = vunpack.c.0.s8 %v1801
      %v1803 = vlaneseq
      %v1804 = vshrl.u32 %v1803, 7
      %v1805 = vsub.s32 %v1802, %v1804
      %v1806 = vrot.slane %v1778, %v1805
      %v1807 = vcombine.low %v1785, %v1792
      %v1808 = vcombine.low %v1799, %v1806
      %v1810 = vunpack.c.l.s4 1966171168
      %v1811 = vunpack.c.0.s8 %v1810
      %v1812 = vlaneseq
      %v1813 = vshrl.u32 %v1812, 7
      %v1814 = vsub.s32 %v1811, %v1813
      %v1815 = vrot.slane %v1807, %v1814
      %v1817 = vunpack.c.l.s4 1966171168
      %v1818 = vunpack.c.0.s8 %v1817
      %v1819 = vlaneseq
      %v1820 = vshrl.u32 %v1819, 7
      %v1821 = vsub.s32 %v1818, %v1820
      %v1822 = vrot.slane %v1808, %v1821
      %v1823 = vcombine.low %v1815, %v1822
      %1824 = vset.pattern.permute.xlu0 0
      %1825 = vperm.xlu0 %1824, %v1088
      %v1826 = vpop.permute.xlu0 %1825
      %1827 = vset.pattern.permute.xlu0 0
      %1828 = vperm.xlu0 %1827, %v1137
      %v1829 = vpop.permute.xlu0 %1828
      %1830 = vset.pattern.permute.xlu0 0
      %1831 = vperm.xlu0 %1830, %v1186
      %v1832 = vpop.permute.xlu0 %1831
      %1833 = vset.pattern.permute.xlu0 0
      %1834 = vperm.xlu0 %1833, %v1235
      %v1835 = vpop.permute.xlu0 %1834
      %1836 = vset.pattern.permute.xlu0 0
      %1837 = vperm.xlu0 %1836, %v1284
      %v1838 = vpop.permute.xlu0 %1837
      %1839 = vset.pattern.permute.xlu0 0
      %1840 = vperm.xlu0 %1839, %v1333
      %v1841 = vpop.permute.xlu0 %1840
      %1842 = vset.pattern.permute.xlu0 0
      %1843 = vperm.xlu0 %1842, %v1382
      %v1844 = vpop.permute.xlu0 %1843
      %1845 = vset.pattern.permute.xlu0 0
      %1846 = vperm.xlu0 %1845, %v1431
      %v1847 = vpop.permute.xlu0 %1846
      %1848 = vset.pattern.permute.xlu0 0
      %1849 = vperm.xlu0 %1848, %v1480
      %v1850 = vpop.permute.xlu0 %1849
      %1851 = vset.pattern.permute.xlu0 0
      %1852 = vperm.xlu0 %1851, %v1529
      %v1853 = vpop.permute.xlu0 %1852
      %1854 = vset.pattern.permute.xlu0 0
      %1855 = vperm.xlu0 %1854, %v1578
      %v1856 = vpop.permute.xlu0 %1855
      %1857 = vset.pattern.permute.xlu0 0
      %1858 = vperm.xlu0 %1857, %v1627
      %v1859 = vpop.permute.xlu0 %1858
      %1860 = vset.pattern.permute.xlu0 0
      %1861 = vperm.xlu0 %1860, %v1676
      %v1862 = vpop.permute.xlu0 %1861
      %1863 = vset.pattern.permute.xlu0 0
      %1864 = vperm.xlu0 %1863, %v1725
      %v1865 = vpop.permute.xlu0 %1864
      %1866 = vset.pattern.permute.xlu0 0
      %1867 = vperm.xlu0 %1866, %v1774
      %v1868 = vpop.permute.xlu0 %1867
      %1869 = vset.pattern.permute.xlu0 0
      %1870 = vperm.xlu0 %1869, %v1823
      %v1871 = vpop.permute.xlu0 %1870
      %v1872 = vlaneseq
      %v1873 = vand.u32 %v1872, 127
      %v1874 = vlaneseq
      %v1875 = vshrl.u32 %v1874, 7
      %v1876 = vsub.s32 %v1873, %v1875
      %v1877 = vrot.slane %v1826, %v1876
      %v1878 = vadd.s32 %v1873, 4294967288
      %v1879 = vlaneseq
      %v1880 = vshrl.u32 %v1879, 7
      %v1881 = vsub.s32 %v1878, %v1880
      %v1882 = vrot.slane %v1829, %v1881
      %vm1883 = vcmask 130112
      %v1884 = vsel %vm1883, %v1882, %v1877
      %v1885 = vadd.s32 %v1873, 4294967280
      %v1886 = vlaneseq
      %v1887 = vshrl.u32 %v1886, 7
      %v1888 = vsub.s32 %v1885, %v1887
      %v1889 = vrot.slane %v1832, %v1888
      %vm1890 = vcmask 195712
      %v1891 = vsel %vm1890, %v1889, %v1884
      %v1892 = vadd.s32 %v1873, 4294967272
      %v1893 = vlaneseq
      %v1894 = vshrl.u32 %v1893, 7
      %v1895 = vsub.s32 %v1892, %v1894
      %v1896 = vrot.slane %v1835, %v1895
      %vm1897 = vcmask 261312
      %v1898 = vsel %vm1897, %v1896, %v1891
      %v1899 = vadd.s32 %v1873, 4294967264
      %v1900 = vlaneseq
      %v1901 = vshrl.u32 %v1900, 7
      %v1902 = vsub.s32 %v1899, %v1901
      %v1903 = vrot.slane %v1838, %v1902
      %vm1904 = vcmask 326912
      %v1905 = vsel %vm1904, %v1903, %v1898
      %v1906 = vadd.s32 %v1873, 4294967256
      %v1907 = vlaneseq
      %v1908 = vshrl.u32 %v1907, 7
      %v1909 = vsub.s32 %v1906, %v1908
      %v1910 = vrot.slane %v1841, %v1909
      %vm1911 = vcmask 392512
      %v1912 = vsel %vm1911, %v1910, %v1905
      %v1913 = vadd.s32 %v1873, 4294967248
      %v1914 = vlaneseq
      %v1915 = vshrl.u32 %v1914, 7
      %v1916 = vsub.s32 %v1913, %v1915
      %v1917 = vrot.slane %v1844, %v1916
      %vm1918 = vcmask 458112
      %v1919 = vsel %vm1918, %v1917, %v1912
      %v1920 = vadd.s32 %v1873, 4294967240
      %v1921 = vlaneseq
      %v1922 = vshrl.u32 %v1921, 7
      %v1923 = vsub.s32 %v1920, %v1922
      %v1924 = vrot.slane %v1847, %v1923
      %vm1925 = vcmask 523712
      %v1926 = vsel %vm1925, %v1924, %v1919
      %v1927 = vadd.s32 %v1873, 4294967232
      %v1928 = vlaneseq
      %v1929 = vshrl.u32 %v1928, 7
      %v1930 = vsub.s32 %v1927, %v1929
      %v1931 = vrot.slane %v1850, %v1930
      %vm1932 = vcmask 589312
      %v1933 = vsel %vm1932, %v1931, %v1926
      %v1934 = vadd.s32 %v1873, 4294967224
      %v1935 = vlaneseq
      %v1936 = vshrl.u32 %v1935, 7
      %v1937 = vsub.s32 %v1934, %v1936
      %v1938 = vrot.slane %v1853, %v1937
      %vm1939 = vcmask 654912
      %v1940 = vsel %vm1939, %v1938, %v1933
      %v1941 = vadd.s32 %v1873, 4294967216
      %v1942 = vlaneseq
      %v1943 = vshrl.u32 %v1942, 7
      %v1944 = vsub.s32 %v1941, %v1943
      %v1945 = vrot.slane %v1856, %v1944
      %vm1946 = vcmask 720512
      %v1947 = vsel %vm1946, %v1945, %v1940
      %v1948 = vadd.s32 %v1873, 4294967208
      %v1949 = vlaneseq
      %v1950 = vshrl.u32 %v1949, 7
      %v1951 = vsub.s32 %v1948, %v1950
      %v1952 = vrot.slane %v1859, %v1951
      %vm1953 = vcmask 786112
      %v1954 = vsel %vm1953, %v1952, %v1947
      %v1955 = vadd.s32 %v1873, 4294967200
      %v1956 = vlaneseq
      %v1957 = vshrl.u32 %v1956, 7
      %v1958 = vsub.s32 %v1955, %v1957
      %v1959 = vrot.slane %v1862, %v1958
      %vm1960 = vcmask 851712
      %v1961 = vsel %vm1960, %v1959, %v1954
      %v1962 = vadd.s32 %v1873, 4294967192
      %v1963 = vlaneseq
      %v1964 = vshrl.u32 %v1963, 7
      %v1965 = vsub.s32 %v1962, %v1964
      %v1966 = vrot.slane %v1865, %v1965
      %vm1967 = vcmask 917312
      %v1968 = vsel %vm1967, %v1966, %v1961
      %v1969 = vadd.s32 %v1873, 4294967184
      %v1970 = vlaneseq
      %v1971 = vshrl.u32 %v1970, 7
      %v1972 = vsub.s32 %v1969, %v1971
      %v1973 = vrot.slane %v1868, %v1972
      %vm1974 = vcmask 982912
      %v1975 = vsel %vm1974, %v1973, %v1968
      %v1976 = vadd.s32 %v1873, 4294967176
      %v1977 = vlaneseq
      %v1978 = vshrl.u32 %v1977, 7
      %v1979 = vsub.s32 %v1976, %v1978
      %v1980 = vrot.slane %v1871, %v1979
      %vm1981 = vcmask 1048512
      %v1982 = vsel %vm1981, %v1980, %v1975
      %v1984 = vunpack.c.l.s4 1966171168
      %v1985 = vunpack.c.0.s8 %v1984
      %v1986 = vlaneseq
      %v1987 = vshrl.u32 %v1986, 7
      %v1988 = vsub.s32 %v1985, %v1987
      %v1989 = vrot.slane %v1982, %v1988
      %v1991 = vunpack.c.l.s4 1966171168
      %v1992 = vunpack.c.0.s8 %v1991
      %v1993 = vlaneseq
      %v1994 = vshrl.u32 %v1993, 7
      %v1995 = vsub.s32 %v1992, %v1994
      %v1996 = vrot.slane %v1989, %v1995
      %v1998 = vmin.f32 %v479, %v1996
      %1999 = vst [vmem:[%s243] sm:$0x1] %v1998
      %s2000 = smul.u32 %s22, 128
      %p2001 = scmp.eq.s32.totalorder %s21, 0
      // Predicated region
      $region33: #{chamfer_distance.1} parent=27 // pred_check
        %p2002 = pneg %p2001
      $region34: #{chamfer_distance.1} parent=27 // pred_check_branch
        %2004 = sbr.rel (%p2002) target = $region36
      $region35: #{chamfer_distance.1} parent=27 // pred_region
        %s2005 = sshra.s32 %s2000, 7
        %s2006 = sand.u32 %s2000, 127
        %s2007 = scalar_lea.vmem %s246, %s2005
        %2008 = vst [vmem:[%s2007] sm:$0x1] inf
      $region36: #{chamfer_distance.1} parent=27 // pred_fallthru
        _
      %s2009 = sshra.s32 %s2000, 7
      %s2010 = sand.u32 %s2000, 127
      %s2011 = scalar_lea.vmem %s246, %s2009
      %v2012 = vld [vmem:[%s2011] sm:$0x1]
      %v2013 = vmin.f32 %v458, %v462
      %v2014 = vmin.f32 %v459, %v463
      %v2015 = vmin.f32 %v460, %v464
      %v2016 = vmin.f32 %v461, %v465
      %v2017 = vmin.f32 %v2013, %v466
      %v2018 = vmin.f32 %v2014, %v467
      %v2019 = vmin.f32 %v2015, %v468
      %v2020 = vmin.f32 %v2016, %v469
      %v2021 = vmin.f32 %v2017, %v470
      %v2022 = vmin.f32 %v2018, %v471
      %v2023 = vmin.f32 %v2019, %v472
      %v2024 = vmin.f32 %v2020, %v473
      %v2025 = vmin.f32 %v2021, %v2022
      %v2026 = vmin.f32 %v2023, %v2024
      %v2027 = vmin.f32 %v2025, %v2026
      %v2028 = vrot.slane %v2027, 4
      %v2029 = vmin.f32 %v2027, %v2028
      %v2030 = vrot.slane %v2029, 2
      %v2031 = vmin.f32 %v2029, %v2030
      %v2032 = vrot.slane %v2031, 1
      %v2033 = vmin.f32 %v2031, %v2032
      %v2034 = vmin.f32 %v2012, %v2033
      %2035 = vst [vmem:[%s2011] sm:$0x1] %v2034
      %p2036 = scmp.lt.s32.totalorder %s20, 1
      %s2037 = scalar_select %p2036, %s20, 1
      %p2038 = scmp.lt.s32.totalorder %s21, 0
      %s2039 = scalar_select %p2038, %s21, 0
      %s2040 = sadd.s32 %s2039, %s2037
      %s2041 = scalar_lea.vmem %s2, %s2040
      %p2042 = scmp.lt.s32.totalorder %s20, 1
      %s2043 = scalar_select %p2042, %s20, 1
      %s2044 = scalar_lea.vmem %s3, %s2043
      // Predicated region
      $region37: #{chamfer_distance.1} parent=27 // pred_check
        %p2045 = pneg %p110
      $region38: #{chamfer_distance.1} parent=27 // pred_check_branch
        %2047 = sbr.rel (%p2045) target = $region40
      $region39: #{chamfer_distance.1} parent=27 // pred_region
        _
      $region40: #{chamfer_distance.1} parent=27 // pred_fallthru
        _
      // Predicated region
      $region41: #{chamfer_distance.1} parent=27 // pred_check
        %p2048 = pneg %p136
      $region42: #{chamfer_distance.1} parent=27 // pred_check_branch
        %2050 = sbr.rel (%p2048) target = $region44
      $region43: #{chamfer_distance.1} parent=27 // pred_region
        _
      $region44: #{chamfer_distance.1} parent=27 // pred_fallthru
        _
    $region28: #{chamfer_distance.1} parent=5 // pred_fallthru
      _
    %p2051 = scmp.le.s32.totalorder 2, %s10
    // Predicated region
    $region45: #{chamfer_distance.1} parent=5 // pred_check
      %p2052 = pneg %p2051
    $region46: #{chamfer_distance.1} parent=5 // pred_check_branch
      %2054 = sbr.rel (%p2052) target = $region48
    $region47: #{chamfer_distance.1} parent=5 // pred_region
      %s2055 = ssub.s32 %s10, 2
      // Predicated region
      $region49: #{chamfer_distance.1} parent=47 // pred_check
        %p2056 = pneg %p116
      $region50: #{chamfer_distance.1} parent=47 // pred_check_branch
        %2058 = sbr.rel (%p2056) target = $region52
      $region51: #{chamfer_distance.1} parent=47 // pred_region
        %p2059 = scmp.lt.s32.totalorder %s23, 1
        %s2060 = scalar_select %p2059, %s23, 1
        %p2061 = scmp.lt.s32.totalorder %s24, 0
        %s2062 = scalar_select %p2061, %s24, 0
        %s2063 = sadd.s32 %s2062, %s2060
        %s2064 = scalar_lea.vmem %s2, %s2063
      $region52: #{chamfer_distance.1} parent=47 // pred_fallthru
        _
      // Predicated region
      $region53: #{chamfer_distance.1} parent=47 // pred_check
        %p2065 = pneg %p142
      $region54: #{chamfer_distance.1} parent=47 // pred_check_branch
        %2067 = sbr.rel (%p2065) target = $region56
      $region55: #{chamfer_distance.1} parent=47 // pred_region
        %p2068 = scmp.lt.s32.totalorder %s23, 1
        %s2069 = scalar_select %p2068, %s23, 1
        %s2070 = scalar_lea.vmem %s3, %s2069
      $region56: #{chamfer_distance.1} parent=47 // pred_fallthru
        _
    $region48: #{chamfer_distance.1} parent=5 // pred_fallthru
      _
  $region6: #{chamfer_distance.1} parent=0 // loop_footer
    %s14 = sadd.s32 1, %s10
  $region7: #{chamfer_distance.1} parent=0 // loop_footer_branch
    %9 = sbr.rel target = $region3
  $region8: #{chamfer_distance.1} parent=0 // loop_exit
    _

</llo_original>
